<compile_context>
chip_gen: v7x
topology: tpu7x:2x2x1
jax: 0.10.0
libtpu: 0.0.40
codegen_flags: <defaults>
</compile_context>

<pallas_src>
import functools

import jax
import jax.numpy as jnp
import numpy as np
from jax import lax
from jax.experimental import pallas as pl
from jax.experimental.pallas import tpu as pltpu


def _round_up(x, m):
    return ((x + m - 1) // m) * m


# Packed gate order inside the lane-dense gate slab: (i, f, o, g).
# PyTorch nn.LSTM stores gates as (i, f, g, o); _PACK_SRC maps packed slot -> torch slot.
_PACK_SRC = (0, 1, 3, 2)


# ----------------------------------------------------------------------------
# Pallas kernel: whole sequence (for one batch tile) in one invocation.
# ----------------------------------------------------------------------------
def _char_decoder_kernel(
    xw_ref,       # (L, bt, G4)  gathered fused emb@W_ih^T + b, gate-packed
    h0_ref,       # (bt, HS)     initial hidden state (real lanes [0, H))
    c0_ref,       # (bt, HS)     initial cell state
    w_hh_ref,     # (HS, G4)     hidden->gates weight (rows [0,H) nonzero)
    w_proj_ref,   # (HS, Vp)     output projection weight (rows [0,H) nonzero)
    b_proj_ref,   # (1, Vp)      output projection bias
    scores_ref,   # (L, bt, Vp)  output scores (lane-dense)
    h_out_ref,    # (bt, HS)     final hidden state
    c_out_ref,    # (bt, HS)     final cell state
    h_all_scr,    # VMEM (L*bt, HS)  per-step hidden states (projected after loop)
    *, H,
):
    L, bt, G4 = xw_ref.shape

    w_hh = w_hh_ref[...]                      # (HS, G4), loaded once for the loop
    # TODO(synk): keep W_hh resident in the MXU across the unrolled recurrence
    # (pltpu.matmul_push_rhs / matmul_acc_lhs / matmul_pop) to avoid re-pushing
    # the RHS every step, and accumulate xw_t in the MRB on v7x.

    # Lane mask, hoisted out of the loop: packed order (i,f,o,g) puts the three
    # sigmoid gates in lanes [0,3H) and the tanh gate in [3H,4H).
    lane = lax.broadcasted_iota(jnp.int32, (bt, G4), 1)
    sig_mask = lane < 3 * H

    # Serial recurrence. L is static and small -> fully unrolled, all slices
    # static, h/c carried in vregs. Lanes >= H of h/c carry bounded junk that
    # never feeds real lanes (W_hh / W_proj rows [H:] are zero, outputs are
    # sliced to [:H] by the wrapper).
    # TODO(synk): switch to lax.fori_loop(..., unroll=4) with pl.ds indices if L grows.
    h = h0_ref[...]
    c = c0_ref[...]
    for t in range(L):
        gates = xw_ref[t] + jnp.dot(h, w_hh, preferred_element_type=jnp.float32)
        # sigmoid(x) = 0.5*(tanh(x/2)+1): ONE tanh (EUP) over the whole 128-lane slab.
        pre = jnp.where(sig_mask, 0.5 * gates, gates)
        tv = jnp.tanh(pre)
        act = jnp.where(sig_mask, 0.5 * (tv + 1.0), tv)
        # Rotate each gate's H lanes down to [0, H) (XLU, off the VALU path).
        i_g = act
        f_g = pltpu.roll(act, G4 - 1 * H, 1)
        o_g = pltpu.roll(act, G4 - 2 * H, 1)
        g_g = pltpu.roll(act, G4 - 3 * H, 1)
        c = f_g * c + i_g * g_g
        h = o_g * jnp.tanh(c)
        h_all_scr[t * bt:(t + 1) * bt, :] = h

    h_out_ref[...] = h
    c_out_ref[...] = c

    # Deferred output projection: one big matmul, lane-dense store.
    # TODO(synk): on v6e/v7x cast matmul operands to bf16 (keep f32 accumulation).
    proj = jnp.dot(h_all_scr[...], w_proj_ref[...],
                   preferred_element_type=jnp.float32) + b_proj_ref[...]
    scores_ref[...] = proj.reshape(scores_ref.shape)


# ----------------------------------------------------------------------------
# One-time parameter preparation (hoisted out of the per-call path).
# ----------------------------------------------------------------------------
def prepare_char_decoder_params(params):
    H = params["w_hh"].shape[1]
    V = params["w_proj"].shape[0]
    G4 = _round_up(4 * H, 128)      # packed, lane-dense gate width
    HS = G4                         # padded state width (matches the gate slab)
    Vp = _round_up(V, 128)          # lane-dense scores width

    f32 = jnp.float32
    w_ih = params["w_ih"].astype(f32)                     # (4H, E), torch (i,f,g,o)
    w_hh = params["w_hh"].astype(f32)                     # (4H, H)
    b = (params["b_ih"] + params["b_hh"]).astype(f32)     # (4H,)

    # Fuse the embedding table with the input->gate transform (+ bias): the
    # per-token input contribution becomes a single gather at call time.
    fused_src = params["emb"].astype(f32) @ w_ih.T + b    # (Vocab, 4H)

    fused = jnp.zeros((fused_src.shape[0], G4), f32)
    w_hh_p = jnp.zeros((HS, G4), f32)
    for p, k in enumerate(_PACK_SRC):
        fused = fused.at[:, p * H:(p + 1) * H].set(fused_src[:, k * H:(k + 1) * H])
        w_hh_p = w_hh_p.at[:H, p * H:(p + 1) * H].set(w_hh[k * H:(k + 1) * H, :].T)

    w_proj_p = jnp.zeros((HS, Vp), f32).at[:H, :V].set(params["w_proj"].astype(f32).T)
    b_proj_p = jnp.zeros((1, Vp), f32).at[0, :V].set(params["b_proj"].astype(f32))

    return {
        "fused_emb": fused, "w_hh": w_hh_p, "w_proj": w_proj_p, "b_proj": b_proj_p,
        "H": H, "V": V, "G4": G4, "HS": HS, "Vp": Vp,
    }


# ----------------------------------------------------------------------------
# Wrapper: CharDecoder.forward
# ----------------------------------------------------------------------------
def char_decoder_forward(input_ids, prep, dec_hidden=None):
    """input_ids: (L, B) int32. Returns (scores (L,B,V), (h (1,B,H), c (1,B,H)))."""
    L, B = input_ids.shape
    H, V = prep["H"], prep["V"]
    G4, HS, Vp = prep["G4"], prep["HS"], prep["Vp"]

    # Batch tiling: one tile for small B; two "parallel" tiles for large B so
    # v7x's second TensorCore picks up the other half (recurrence is batch-parallel).
    Bp = _round_up(B, 8)
    if Bp >= 64:
        bt = _round_up((Bp + 1) // 2, 8)
        n_bt = 2
        Bp = n_bt * bt
    else:
        bt, n_bt = Bp, 1

    # Per-call glue: pad ids with padding_idx=0 and gather the fused table.
    ids_p = jnp.zeros((L, Bp), input_ids.dtype).at[:, :B].set(input_ids)
    xw = jnp.take(prep["fused_emb"], ids_p, axis=0)          # (L, Bp, G4)

    if dec_hidden is None:
        h0 = jnp.zeros((1, B, H), jnp.float32)
        c0 = jnp.zeros((1, B, H), jnp.float32)
    else:
        h0, c0 = dec_hidden
    h0p = jnp.zeros((Bp, HS), jnp.float32).at[:B, :H].set(h0[0])
    c0p = jnp.zeros((Bp, HS), jnp.float32).at[:B, :H].set(c0[0])

    kernel = functools.partial(_char_decoder_kernel, H=H)
    scores_p, h_p, c_p = pl.pallas_call(
        kernel,
        grid=(n_bt,),
        in_specs=[
            pl.BlockSpec((L, bt, G4), lambda i: (0, i, 0)),   # xw (gathered inputs)
            pl.BlockSpec((bt, HS), lambda i: (i, 0)),         # h0
            pl.BlockSpec((bt, HS), lambda i: (i, 0)),         # c0
            pl.BlockSpec((HS, G4), lambda i: (0, 0)),         # W_hh (packed)
            pl.BlockSpec((HS, Vp), lambda i: (0, 0)),         # W_proj (packed)
            pl.BlockSpec((1, Vp), lambda i: (0, 0)),          # b_proj
        ],
        out_specs=(
            pl.BlockSpec((L, bt, Vp), lambda i: (0, i, 0)),   # scores
            pl.BlockSpec((bt, HS), lambda i: (i, 0)),         # h_T
            pl.BlockSpec((bt, HS), lambda i: (i, 0)),         # c_T
        ),
        out_shape=(
            jax.ShapeDtypeStruct((L, Bp, Vp), jnp.float32),
            jax.ShapeDtypeStruct((Bp, HS), jnp.float32),
            jax.ShapeDtypeStruct((Bp, HS), jnp.float32),
        ),
        scratch_shapes=[pltpu.VMEM((L * bt, HS), jnp.float32)],
        compiler_params=pltpu.CompilerParams(
            dimension_semantics=("parallel",),
            vmem_limit_bytes=32 * 1024 * 1024,
        ),
    )(xw, h0p, c0p, prep["w_hh"], prep["w_proj"], prep["b_proj"])

    scores = scores_p[:, :B, :V]
    h_t = h_p[:B, :H][None]
    c_t = c_p[:B, :H][None]
    return scores, (h_t, c_t)


# ----------------------------------------------------------------------------
# Pure-JAX reference (for correctness check).
# ----------------------------------------------------------------------------
def char_decoder_forward_ref(input_ids, params, dec_hidden=None):
    L, B = input_ids.shape
    H = params["w_hh"].shape[1]
    emb = jnp.take(params["emb"], input_ids, axis=0)
    if dec_hidden is None:
        h0 = jnp.zeros((B, H), jnp.float32)
        c0 = jnp.zeros((B, H), jnp.float32)
    else:
        h0, c0 = dec_hidden[0][0], dec_hidden[1][0]

    def step(carry, x_t):
        h, c = carry
        gates = x_t @ params["w_ih"].T + h @ params["w_hh"].T \
                + params["b_ih"] + params["b_hh"]
        i_g = jax.nn.sigmoid(gates[:, 0 * H:1 * H])
        f_g = jax.nn.sigmoid(gates[:, 1 * H:2 * H])
        g_g = jnp.tanh(gates[:, 2 * H:3 * H])
        o_g = jax.nn.sigmoid(gates[:, 3 * H:4 * H])
        c_new = f_g * c + i_g * g_g
        h_new = o_g * jnp.tanh(c_new)
        s = h_new @ params["w_proj"].T + params["b_proj"]
        return (h_new, c_new), (s, h_new)

    (hT, cT), (scores, _) = lax.scan(step, (h0, c0), emb)
    return scores, (hT[None], cT[None])


# ----------------------------------------------------------------------------
# Deterministic parameter init (mirrors CharDecoder.__init__ shapes).
# ----------------------------------------------------------------------------
def init_params(key, vocab_size, char_embedding_size, hidden_size, padding_idx):
    ks = jax.random.split(key, 7)
    scale = 0.1
    emb = scale * jax.random.normal(ks[0], (vocab_size, char_embedding_size), jnp.float32)
    emb = emb.at[padding_idx].set(0.0)  # nn.Embedding(padding_idx=...) zero row
    return {
        "emb": emb,                                                                   # (V, E)
        "w_ih": scale * jax.random.normal(ks[1], (4 * hidden_size, char_embedding_size), jnp.float32),
        "w_hh": scale * jax.random.normal(ks[2], (4 * hidden_size, hidden_size), jnp.float32),
        "b_ih": scale * jax.random.normal(ks[3], (4 * hidden_size,), jnp.float32),
        "b_hh": scale * jax.random.normal(ks[4], (4 * hidden_size,), jnp.float32),
        "w_proj": scale * jax.random.normal(ks[5], (vocab_size, hidden_size), jnp.float32),
        "b_proj": scale * jax.random.normal(ks[6], (vocab_size,), jnp.float32),
    }


if __name__ == "__main__":
    key = jax.random.PRNGKey(0)
    hidden_size = 32
    char_embedding_size = 50
    vocab_size = 30           # len(target_vocab.char2id)
    padding_idx = 0           # target_vocab.char2id['<pad>']
    L, B = 8, 4               # (length, batch)

    k_par, k_inp, k_h, k_c = jax.random.split(key, 4)
    params = init_params(k_par, vocab_size, char_embedding_size, hidden_size, padding_idx)
    prep = prepare_char_decoder_params(params)   # one-time weight packing (hoisted)

    input_ids = jax.random.randint(k_inp, (L, B), 0, vocab_size, dtype=jnp.int32)
    dec_hidden = (
        0.1 * jax.random.normal(k_h, (1, B, hidden_size), jnp.float32),
        0.1 * jax.random.normal(k_c, (1, B, hidden_size), jnp.float32),
    )

    scores, (h_t, c_t) = char_decoder_forward(input_ids, prep, dec_hidden)
    jax.block_until_ready((scores, h_t, c_t))

    # correctness check vs. pure-JAX reference
    scores_ref, (h_ref, c_ref) = char_decoder_forward_ref(input_ids, params, dec_hidden)
    np.testing.assert_allclose(np.asarray(scores), np.asarray(scores_ref), rtol=2e-4, atol=2e-5)
    np.testing.assert_allclose(np.asarray(h_t), np.asarray(h_ref), rtol=2e-4, atol=2e-5)
    np.testing.assert_allclose(np.asarray(c_t), np.asarray(c_ref), rtol=2e-4, atol=2e-5)

    # also check the default (zero) initial-state path
    scores0, (h0_t, c0_t) = char_decoder_forward(input_ids, prep, None)
    scores0_ref, (h0_ref, c0_ref) = char_decoder_forward_ref(input_ids, params, None)
    jax.block_until_ready((scores0, h0_t, c0_t))
    np.testing.assert_allclose(np.asarray(scores0), np.asarray(scores0_ref), rtol=2e-4, atol=2e-5)
    np.testing.assert_allclose(np.asarray(h0_t), np.asarray(h0_ref), rtol=2e-4, atol=2e-5)
    np.testing.assert_allclose(np.asarray(c0_t), np.asarray(c0_ref), rtol=2e-4, atol=2e-5)

    assert scores.shape == (L, B, vocab_size)
    assert h_t.shape == (1, B, hidden_size) and c_t.shape == (1, B, hidden_size)
    print("KERNEL_OK")
</pallas_src>

<mosaic_0001>
module attributes {stable_mosaic.version = 11 : i64} {
  func.func @_char_decoder_kernel(%arg0: i32, %arg1: memref<8x8x128xf32, #tpu.memory_space<vmem>>, %arg2: memref<8x128xf32, #tpu.memory_space<vmem>>, %arg3: memref<8x128xf32, #tpu.memory_space<vmem>>, %arg4: memref<128x128xf32, #tpu.memory_space<vmem>>, %arg5: memref<128x128xf32, #tpu.memory_space<vmem>>, %arg6: memref<1x128xf32, #tpu.memory_space<vmem>>, %arg7: memref<8x8x128xf32, #tpu.memory_space<vmem>>, %arg8: memref<8x128xf32, #tpu.memory_space<vmem>>, %arg9: memref<8x128xf32, #tpu.memory_space<vmem>>, %arg10: memref<64x128xf32, #tpu.memory_space<vmem>>) attributes {dimension_semantics = [#tpu.dimension_semantics<parallel>], iteration_bounds = array<i64: 1>, scalar_prefetch = 0 : i64, scratch_operands = 1 : i64, tpu.core_type = #tpu.core_type<tc>, window_params = [{transform_indices = @transform_0, window_bounds = array<i64: 8, 8, 128>}, {transform_indices = @transform_1, window_bounds = array<i64: 8, 128>}, {transform_indices = @transform_2, window_bounds = array<i64: 8, 128>}, {pipeline_mode = #tpu.pipeline_mode<synchronous>, transform_indices = @transform_3, window_bounds = array<i64: 128, 128>}, {pipeline_mode = #tpu.pipeline_mode<synchronous>, transform_indices = @transform_4, window_bounds = array<i64: 128, 128>}, {pipeline_mode = #tpu.pipeline_mode<synchronous>, transform_indices = @transform_5, window_bounds = array<i64: 1, 128>}, {transform_indices = @transform_6, window_bounds = array<i64: 8, 8, 128>}, {transform_indices = @transform_7, window_bounds = array<i64: 8, 128>}, {transform_indices = @transform_8, window_bounds = array<i64: 8, 128>}]} {
    %c0 = arith.constant 0 : index
    %c0_0 = arith.constant 0 : index
    %0 = vector.load %arg4[%c0, %c0_0] : memref<128x128xf32, #tpu.memory_space<vmem>>, vector<128x128xf32>
    %1 = tpu.iota {dimensions = array<i32: 1>} : vector<8x128xi32>
    %c96_i32 = arith.constant 96 : i32
    %2 = vector.broadcast %c96_i32 : i32 to vector<8x128xi32>
    %3 = arith.cmpi slt, %1, %2 : vector<8x128xi32>
    %c0_1 = arith.constant 0 : index
    %c0_2 = arith.constant 0 : index
    %4 = vector.load %arg2[%c0_1, %c0_2] : memref<8x128xf32, #tpu.memory_space<vmem>>, vector<8x128xf32>
    %c0_3 = arith.constant 0 : index
    %c0_4 = arith.constant 0 : index
    %5 = vector.load %arg3[%c0_3, %c0_4] : memref<8x128xf32, #tpu.memory_space<vmem>>, vector<8x128xf32>
    %c0_5 = arith.constant 0 : index
    %c0_6 = arith.constant 0 : index
    %c0_7 = arith.constant 0 : index
    %6 = vector.load %arg1[%c0_5, %c0_6, %c0_7] : memref<8x8x128xf32, #tpu.memory_space<vmem>>, vector<1x8x128xf32>
    %7 = vector.shape_cast %6 : vector<1x8x128xf32> to vector<8x128xf32>
    %cst = arith.constant dense<0.000000e+00> : vector<8x128xf32>
    %8 = tpu.matmul %4, %0, %cst {dimension_numbers = #tpu.dot_dimension_numbers<[1], [0], [0], [1], [0, 0, 1, 1], [], []>} : vector<8x128xf32>, vector<128x128xf32>, vector<8x128xf32> -> vector<8x128xf32>
    %9 = arith.addf %7, %8 : vector<8x128xf32>
    %cst_8 = arith.constant 5.000000e-01 : f32
    %10 = vector.broadcast %cst_8 : f32 to vector<8x128xf32>
    %11 = arith.mulf %10, %9 : vector<8x128xf32>
    %12 = arith.select %3, %11, %9 : vector<8x128xi1>, vector<8x128xf32>
    %13 = math.tanh %12 : vector<8x128xf32>
    %cst_9 = arith.constant 1.000000e+00 : f32
    %14 = vector.broadcast %cst_9 : f32 to vector<8x128xf32>
    %15 = arith.addf %13, %14 : vector<8x128xf32>
    %cst_10 = arith.constant 5.000000e-01 : f32
    %16 = vector.broadcast %cst_10 : f32 to vector<8x128xf32>
    %17 = arith.mulf %16, %15 : vector<8x128xf32>
    %18 = arith.select %3, %17, %13 : vector<8x128xi1>, vector<8x128xf32>
    %c96_i32_11 = arith.constant 96 : i32
    %19 = tpu.dynamic_rotate %18 by %c96_i32_11 dim 1 : vector<8x128xf32>, i32 -> vector<8x128xf32>
    %c64_i32 = arith.constant 64 : i32
    %20 = tpu.dynamic_rotate %18 by %c64_i32 dim 1 : vector<8x128xf32>, i32 -> vector<8x128xf32>
    %c32_i32 = arith.constant 32 : i32
    %21 = tpu.dynamic_rotate %18 by %c32_i32 dim 1 : vector<8x128xf32>, i32 -> vector<8x128xf32>
    %22 = arith.mulf %19, %5 : vector<8x128xf32>
    %23 = arith.mulf %18, %21 : vector<8x128xf32>
    %24 = arith.addf %22, %23 : vector<8x128xf32>
    %25 = math.tanh %24 : vector<8x128xf32>
    %26 = arith.mulf %20, %25 : vector<8x128xf32>
    %c0_12 = arith.constant 0 : index
    %c0_13 = arith.constant 0 : index
    %27 = vector.load %arg10[%c0_12, %c0_13] : memref<64x128xf32, #tpu.memory_space<vmem>>, vector<8x128xf32>
    tpu.vector_store %arg10[%c0_12, %c0_13], %26 {strides = array<i32>} : memref<64x128xf32, #tpu.memory_space<vmem>>, vector<8x128xf32>,
    %c1 = arith.constant 1 : index
    %c0_14 = arith.constant 0 : index
    %c0_15 = arith.constant 0 : index
    %28 = vector.load %arg1[%c1, %c0_14, %c0_15] : memref<8x8x128xf32, #tpu.memory_space<vmem>>, vector<1x8x128xf32>
    %29 = vector.shape_cast %28 : vector<1x8x128xf32> to vector<8x128xf32>
    %cst_16 = arith.constant dense<0.000000e+00> : vector<8x128xf32>
    %30 = tpu.matmul %26, %0, %cst_16 {dimension_numbers = #tpu.dot_dimension_numbers<[1], [0], [0], [1], [0, 0, 1, 1], [], []>} : vector<8x128xf32>, vector<128x128xf32>, vector<8x128xf32> -> vector<8x128xf32>
    %31 = arith.addf %29, %30 : vector<8x128xf32>
    %cst_17 = arith.constant 5.000000e-01 : f32
    %32 = vector.broadcast %cst_17 : f32 to vector<8x128xf32>
    %33 = arith.mulf %32, %31 : vector<8x128xf32>
    %34 = arith.select %3, %33, %31 : vector<8x128xi1>, vector<8x128xf32>
    %35 = math.tanh %34 : vector<8x128xf32>
    %cst_18 = arith.constant 1.000000e+00 : f32
    %36 = vector.broadcast %cst_18 : f32 to vector<8x128xf32>
    %37 = arith.addf %35, %36 : vector<8x128xf32>
    %cst_19 = arith.constant 5.000000e-01 : f32
    %38 = vector.broadcast %cst_19 : f32 to vector<8x128xf32>
    %39 = arith.mulf %38, %37 : vector<8x128xf32>
    %40 = arith.select %3, %39, %35 : vector<8x128xi1>, vector<8x128xf32>
    %c96_i32_20 = arith.constant 96 : i32
    %41 = tpu.dynamic_rotate %40 by %c96_i32_20 dim 1 : vector<8x128xf32>, i32 -> vector<8x128xf32>
    %c64_i32_21 = arith.constant 64 : i32
    %42 = tpu.dynamic_rotate %40 by %c64_i32_21 dim 1 : vector<8x128xf32>, i32 -> vector<8x128xf32>
    %c32_i32_22 = arith.constant 32 : i32
    %43 = tpu.dynamic_rotate %40 by %c32_i32_22 dim 1 : vector<8x128xf32>, i32 -> vector<8x128xf32>
    %44 = arith.mulf %41, %24 : vector<8x128xf32>
    %45 = arith.mulf %40, %43 : vector<8x128xf32>
    %46 = arith.addf %44, %45 : vector<8x128xf32>
    %47 = math.tanh %46 : vector<8x128xf32>
    %48 = arith.mulf %42, %47 : vector<8x128xf32>
    %c8 = arith.constant 8 : index
    %c0_23 = arith.constant 0 : index
    %49 = vector.load %arg10[%c8, %c0_23] : memref<64x128xf32, #tpu.memory_space<vmem>>, vector<8x128xf32>
    tpu.vector_store %arg10[%c8, %c0_23], %48 {strides = array<i32>} : memref<64x128xf32, #tpu.memory_space<vmem>>, vector<8x128xf32>,
    %c2 = arith.constant 2 : index
    %c0_24 = arith.constant 0 : index
    %c0_25 = arith.constant 0 : index
    %50 = vector.load %arg1[%c2, %c0_24, %c0_25] : memref<8x8x128xf32, #tpu.memory_space<vmem>>, vector<1x8x128xf32>
    %51 = vector.shape_cast %50 : vector<1x8x128xf32> to vector<8x128xf32>
    %cst_26 = arith.constant dense<0.000000e+00> : vector<8x128xf32>
    %52 = tpu.matmul %48, %0, %cst_26 {dimension_numbers = #tpu.dot_dimension_numbers<[1], [0], [0], [1], [0, 0, 1, 1], [], []>} : vector<8x128xf32>, vector<128x128xf32>, vector<8x128xf32> -> vector<8x128xf32>
    %53 = arith.addf %51, %52 : vector<8x128xf32>
    %cst_27 = arith.constant 5.000000e-01 : f32
    %54 = vector.broadcast %cst_27 : f32 to vector<8x128xf32>
    %55 = arith.mulf %54, %53 : vector<8x128xf32>
    %56 = arith.select %3, %55, %53 : vector<8x128xi1>, vector<8x128xf32>
    %57 = math.tanh %56 : vector<8x128xf32>
    %cst_28 = arith.constant 1.000000e+00 : f32
    %58 = vector.broadcast %cst_28 : f32 to vector<8x128xf32>
    %59 = arith.addf %57, %58 : vector<8x128xf32>
    %cst_29 = arith.constant 5.000000e-01 : f32
    %60 = vector.broadcast %cst_29 : f32 to vector<8x128xf32>
    %61 = arith.mulf %60, %59 : vector<8x128xf32>
    %62 = arith.select %3, %61, %57 : vector<8x128xi1>, vector<8x128xf32>
    %c96_i32_30 = arith.constant 96 : i32
    %63 = tpu.dynamic_rotate %62 by %c96_i32_30 dim 1 : vector<8x128xf32>, i32 -> vector<8x128xf32>
    %c64_i32_31 = arith.constant 64 : i32
    %64 = tpu.dynamic_rotate %62 by %c64_i32_31 dim 1 : vector<8x128xf32>, i32 -> vector<8x128xf32>
    %c32_i32_32 = arith.constant 32 : i32
    %65 = tpu.dynamic_rotate %62 by %c32_i32_32 dim 1 : vector<8x128xf32>, i32 -> vector<8x128xf32>
    %66 = arith.mulf %63, %46 : vector<8x128xf32>
    %67 = arith.mulf %62, %65 : vector<8x128xf32>
    %68 = arith.addf %66, %67 : vector<8x128xf32>
    %69 = math.tanh %68 : vector<8x128xf32>
    %70 = arith.mulf %64, %69 : vector<8x128xf32>
    %c16 = arith.constant 16 : index
    %c0_33 = arith.constant 0 : index
    %71 = vector.load %arg10[%c16, %c0_33] : memref<64x128xf32, #tpu.memory_space<vmem>>, vector<8x128xf32>
    tpu.vector_store %arg10[%c16, %c0_33], %70 {strides = array<i32>} : memref<64x128xf32, #tpu.memory_space<vmem>>, vector<8x128xf32>,
    %c3 = arith.constant 3 : index
    %c0_34 = arith.constant 0 : index
    %c0_35 = arith.constant 0 : index
    %72 = vector.load %arg1[%c3, %c0_34, %c0_35] : memref<8x8x128xf32, #tpu.memory_space<vmem>>, vector<1x8x128xf32>
    %73 = vector.shape_cast %72 : vector<1x8x128xf32> to vector<8x128xf32>
    %cst_36 = arith.constant dense<0.000000e+00> : vector<8x128xf32>
    %74 = tpu.matmul %70, %0, %cst_36 {dimension_numbers = #tpu.dot_dimension_numbers<[1], [0], [0], [1], [0, 0, 1, 1], [], []>} : vector<8x128xf32>, vector<128x128xf32>, vector<8x128xf32> -> vector<8x128xf32>
    %75 = arith.addf %73, %74 : vector<8x128xf32>
    %cst_37 = arith.constant 5.000000e-01 : f32
    %76 = vector.broadcast %cst_37 : f32 to vector<8x128xf32>
    %77 = arith.mulf %76, %75 : vector<8x128xf32>
    %78 = arith.select %3, %77, %75 : vector<8x128xi1>, vector<8x128xf32>
    %79 = math.tanh %78 : vector<8x128xf32>
    %cst_38 = arith.constant 1.000000e+00 : f32
    %80 = vector.broadcast %cst_38 : f32 to vector<8x128xf32>
    %81 = arith.addf %79, %80 : vector<8x128xf32>
    %cst_39 = arith.constant 5.000000e-01 : f32
    %82 = vector.broadcast %cst_39 : f32 to vector<8x128xf32>
    %83 = arith.mulf %82, %81 : vector<8x128xf32>
    %84 = arith.select %3, %83, %79 : vector<8x128xi1>, vector<8x128xf32>
    %c96_i32_40 = arith.constant 96 : i32
    %85 = tpu.dynamic_rotate %84 by %c96_i32_40 dim 1 : vector<8x128xf32>, i32 -> vector<8x128xf32>
    %c64_i32_41 = arith.constant 64 : i32
    %86 = tpu.dynamic_rotate %84 by %c64_i32_41 dim 1 : vector<8x128xf32>, i32 -> vector<8x128xf32>
    %c32_i32_42 = arith.constant 32 : i32
    %87 = tpu.dynamic_rotate %84 by %c32_i32_42 dim 1 : vector<8x128xf32>, i32 -> vector<8x128xf32>
    %88 = arith.mulf %85, %68 : vector<8x128xf32>
    %89 = arith.mulf %84, %87 : vector<8x128xf32>
    %90 = arith.addf %88, %89 : vector<8x128xf32>
    %91 = math.tanh %90 : vector<8x128xf32>
    %92 = arith.mulf %86, %91 : vector<8x128xf32>
    %c24 = arith.constant 24 : index
    %c0_43 = arith.constant 0 : index
    %93 = vector.load %arg10[%c24, %c0_43] : memref<64x128xf32, #tpu.memory_space<vmem>>, vector<8x128xf32>
    tpu.vector_store %arg10[%c24, %c0_43], %92 {strides = array<i32>} : memref<64x128xf32, #tpu.memory_space<vmem>>, vector<8x128xf32>,
    %c4 = arith.constant 4 : index
    %c0_44 = arith.constant 0 : index
    %c0_45 = arith.constant 0 : index
    %94 = vector.load %arg1[%c4, %c0_44, %c0_45] : memref<8x8x128xf32, #tpu.memory_space<vmem>>, vector<1x8x128xf32>
    %95 = vector.shape_cast %94 : vector<1x8x128xf32> to vector<8x128xf32>
    %cst_46 = arith.constant dense<0.000000e+00> : vector<8x128xf32>
    %96 = tpu.matmul %92, %0, %cst_46 {dimension_numbers = #tpu.dot_dimension_numbers<[1], [0], [0], [1], [0, 0, 1, 1], [], []>} : vector<8x128xf32>, vector<128x128xf32>, vector<8x128xf32> -> vector<8x128xf32>
    %97 = arith.addf %95, %96 : vector<8x128xf32>
    %cst_47 = arith.constant 5.000000e-01 : f32
    %98 = vector.broadcast %cst_47 : f32 to vector<8x128xf32>
    %99 = arith.mulf %98, %97 : vector<8x128xf32>
    %100 = arith.select %3, %99, %97 : vector<8x128xi1>, vector<8x128xf32>
    %101 = math.tanh %100 : vector<8x128xf32>
    %cst_48 = arith.constant 1.000000e+00 : f32
    %102 = vector.broadcast %cst_48 : f32 to vector<8x128xf32>
    %103 = arith.addf %101, %102 : vector<8x128xf32>
    %cst_49 = arith.constant 5.000000e-01 : f32
    %104 = vector.broadcast %cst_49 : f32 to vector<8x128xf32>
    %105 = arith.mulf %104, %103 : vector<8x128xf32>
    %106 = arith.select %3, %105, %101 : vector<8x128xi1>, vector<8x128xf32>
    %c96_i32_50 = arith.constant 96 : i32
    %107 = tpu.dynamic_rotate %106 by %c96_i32_50 dim 1 : vector<8x128xf32>, i32 -> vector<8x128xf32>
    %c64_i32_51 = arith.constant 64 : i32
    %108 = tpu.dynamic_rotate %106 by %c64_i32_51 dim 1 : vector<8x128xf32>, i32 -> vector<8x128xf32>
    %c32_i32_52 = arith.constant 32 : i32
    %109 = tpu.dynamic_rotate %106 by %c32_i32_52 dim 1 : vector<8x128xf32>, i32 -> vector<8x128xf32>
    %110 = arith.mulf %107, %90 : vector<8x128xf32>
    %111 = arith.mulf %106, %109 : vector<8x128xf32>
    %112 = arith.addf %110, %111 : vector<8x128xf32>
    %113 = math.tanh %112 : vector<8x128xf32>
    %114 = arith.mulf %108, %113 : vector<8x128xf32>
    %c32 = arith.constant 32 : index
    %c0_53 = arith.constant 0 : index
    %115 = vector.load %arg10[%c32, %c0_53] : memref<64x128xf32, #tpu.memory_space<vmem>>, vector<8x128xf32>
    tpu.vector_store %arg10[%c32, %c0_53], %114 {strides = array<i32>} : memref<64x128xf32, #tpu.memory_space<vmem>>, vector<8x128xf32>,
    %c5 = arith.constant 5 : index
    %c0_54 = arith.constant 0 : index
    %c0_55 = arith.constant 0 : index
    %116 = vector.load %arg1[%c5, %c0_54, %c0_55] : memref<8x8x128xf32, #tpu.memory_space<vmem>>, vector<1x8x128xf32>
    %117 = vector.shape_cast %116 : vector<1x8x128xf32> to vector<8x128xf32>
    %cst_56 = arith.constant dense<0.000000e+00> : vector<8x128xf32>
    %118 = tpu.matmul %114, %0, %cst_56 {dimension_numbers = #tpu.dot_dimension_numbers<[1], [0], [0], [1], [0, 0, 1, 1], [], []>} : vector<8x128xf32>, vector<128x128xf32>, vector<8x128xf32> -> vector<8x128xf32>
    %119 = arith.addf %117, %118 : vector<8x128xf32>
    %cst_57 = arith.constant 5.000000e-01 : f32
    %120 = vector.broadcast %cst_57 : f32 to vector<8x128xf32>
    %121 = arith.mulf %120, %119 : vector<8x128xf32>
    %122 = arith.select %3, %121, %119 : vector<8x128xi1>, vector<8x128xf32>
    %123 = math.tanh %122 : vector<8x128xf32>
    %cst_58 = arith.constant 1.000000e+00 : f32
    %124 = vector.broadcast %cst_58 : f32 to vector<8x128xf32>
    %125 = arith.addf %123, %124 : vector<8x128xf32>
    %cst_59 = arith.constant 5.000000e-01 : f32
    %126 = vector.broadcast %cst_59 : f32 to vector<8x128xf32>
    %127 = arith.mulf %126, %125 : vector<8x128xf32>
    %128 = arith.select %3, %127, %123 : vector<8x128xi1>, vector<8x128xf32>
    %c96_i32_60 = arith.constant 96 : i32
    %129 = tpu.dynamic_rotate %128 by %c96_i32_60 dim 1 : vector<8x128xf32>, i32 -> vector<8x128xf32>
    %c64_i32_61 = arith.constant 64 : i32
    %130 = tpu.dynamic_rotate %128 by %c64_i32_61 dim 1 : vector<8x128xf32>, i32 -> vector<8x128xf32>
    %c32_i32_62 = arith.constant 32 : i32
    %131 = tpu.dynamic_rotate %128 by %c32_i32_62 dim 1 : vector<8x128xf32>, i32 -> vector<8x128xf32>
    %132 = arith.mulf %129, %112 : vector<8x128xf32>
    %133 = arith.mulf %128, %131 : vector<8x128xf32>
    %134 = arith.addf %132, %133 : vector<8x128xf32>
    %135 = math.tanh %134 : vector<8x128xf32>
    %136 = arith.mulf %130, %135 : vector<8x128xf32>
    %c40 = arith.constant 40 : index
    %c0_63 = arith.constant 0 : index
    %137 = vector.load %arg10[%c40, %c0_63] : memref<64x128xf32, #tpu.memory_space<vmem>>, vector<8x128xf32>
    tpu.vector_store %arg10[%c40, %c0_63], %136 {strides = array<i32>} : memref<64x128xf32, #tpu.memory_space<vmem>>, vector<8x128xf32>,
    %c6 = arith.constant 6 : index
    %c0_64 = arith.constant 0 : index
    %c0_65 = arith.constant 0 : index
    %138 = vector.load %arg1[%c6, %c0_64, %c0_65] : memref<8x8x128xf32, #tpu.memory_space<vmem>>, vector<1x8x128xf32>
    %139 = vector.shape_cast %138 : vector<1x8x128xf32> to vector<8x128xf32>
    %cst_66 = arith.constant dense<0.000000e+00> : vector<8x128xf32>
    %140 = tpu.matmul %136, %0, %cst_66 {dimension_numbers = #tpu.dot_dimension_numbers<[1], [0], [0], [1], [0, 0, 1, 1], [], []>} : vector<8x128xf32>, vector<128x128xf32>, vector<8x128xf32> -> vector<8x128xf32>
    %141 = arith.addf %139, %140 : vector<8x128xf32>
    %cst_67 = arith.constant 5.000000e-01 : f32
    %142 = vector.broadcast %cst_67 : f32 to vector<8x128xf32>
    %143 = arith.mulf %142, %141 : vector<8x128xf32>
    %144 = arith.select %3, %143, %141 : vector<8x128xi1>, vector<8x128xf32>
    %145 = math.tanh %144 : vector<8x128xf32>
    %cst_68 = arith.constant 1.000000e+00 : f32
    %146 = vector.broadcast %cst_68 : f32 to vector<8x128xf32>
    %147 = arith.addf %145, %146 : vector<8x128xf32>
    %cst_69 = arith.constant 5.000000e-01 : f32
    %148 = vector.broadcast %cst_69 : f32 to vector<8x128xf32>
    %149 = arith.mulf %148, %147 : vector<8x128xf32>
    %150 = arith.select %3, %149, %145 : vector<8x128xi1>, vector<8x128xf32>
    %c96_i32_70 = arith.constant 96 : i32
    %151 = tpu.dynamic_rotate %150 by %c96_i32_70 dim 1 : vector<8x128xf32>, i32 -> vector<8x128xf32>
    %c64_i32_71 = arith.constant 64 : i32
    %152 = tpu.dynamic_rotate %150 by %c64_i32_71 dim 1 : vector<8x128xf32>, i32 -> vector<8x128xf32>
    %c32_i32_72 = arith.constant 32 : i32
    %153 = tpu.dynamic_rotate %150 by %c32_i32_72 dim 1 : vector<8x128xf32>, i32 -> vector<8x128xf32>
    %154 = arith.mulf %151, %134 : vector<8x128xf32>
    %155 = arith.mulf %150, %153 : vector<8x128xf32>
    %156 = arith.addf %154, %155 : vector<8x128xf32>
    %157 = math.tanh %156 : vector<8x128xf32>
    %158 = arith.mulf %152, %157 : vector<8x128xf32>
    %c48 = arith.constant 48 : index
    %c0_73 = arith.constant 0 : index
    %159 = vector.load %arg10[%c48, %c0_73] : memref<64x128xf32, #tpu.memory_space<vmem>>, vector<8x128xf32>
    tpu.vector_store %arg10[%c48, %c0_73], %158 {strides = array<i32>} : memref<64x128xf32, #tpu.memory_space<vmem>>, vector<8x128xf32>,
    %c7 = arith.constant 7 : index
    %c0_74 = arith.constant 0 : index
    %c0_75 = arith.constant 0 : index
    %160 = vector.load %arg1[%c7, %c0_74, %c0_75] : memref<8x8x128xf32, #tpu.memory_space<vmem>>, vector<1x8x128xf32>
    %161 = vector.shape_cast %160 : vector<1x8x128xf32> to vector<8x128xf32>
    %cst_76 = arith.constant dense<0.000000e+00> : vector<8x128xf32>
    %162 = tpu.matmul %158, %0, %cst_76 {dimension_numbers = #tpu.dot_dimension_numbers<[1], [0], [0], [1], [0, 0, 1, 1], [], []>} : vector<8x128xf32>, vector<128x128xf32>, vector<8x128xf32> -> vector<8x128xf32>
    %163 = arith.addf %161, %162 : vector<8x128xf32>
    %cst_77 = arith.constant 5.000000e-01 : f32
    %164 = vector.broadcast %cst_77 : f32 to vector<8x128xf32>
    %165 = arith.mulf %164, %163 : vector<8x128xf32>
    %166 = arith.select %3, %165, %163 : vector<8x128xi1>, vector<8x128xf32>
    %167 = math.tanh %166 : vector<8x128xf32>
    %cst_78 = arith.constant 1.000000e+00 : f32
    %168 = vector.broadcast %cst_78 : f32 to vector<8x128xf32>
    %169 = arith.addf %167, %168 : vector<8x128xf32>
    %cst_79 = arith.constant 5.000000e-01 : f32
    %170 = vector.broadcast %cst_79 : f32 to vector<8x128xf32>
    %171 = arith.mulf %170, %169 : vector<8x128xf32>
    %172 = arith.select %3, %171, %167 : vector<8x128xi1>, vector<8x128xf32>
    %c96_i32_80 = arith.constant 96 : i32
    %173 = tpu.dynamic_rotate %172 by %c96_i32_80 dim 1 : vector<8x128xf32>, i32 -> vector<8x128xf32>
    %c64_i32_81 = arith.constant 64 : i32
    %174 = tpu.dynamic_rotate %172 by %c64_i32_81 dim 1 : vector<8x128xf32>, i32 -> vector<8x128xf32>
    %c32_i32_82 = arith.constant 32 : i32
    %175 = tpu.dynamic_rotate %172 by %c32_i32_82 dim 1 : vector<8x128xf32>, i32 -> vector<8x128xf32>
    %176 = arith.mulf %173, %156 : vector<8x128xf32>
    %177 = arith.mulf %172, %175 : vector<8x128xf32>
    %178 = arith.addf %176, %177 : vector<8x128xf32>
    %179 = math.tanh %178 : vector<8x128xf32>
    %180 = arith.mulf %174, %179 : vector<8x128xf32>
    %c56 = arith.constant 56 : index
    %c0_83 = arith.constant 0 : index
    %181 = vector.load %arg10[%c56, %c0_83] : memref<64x128xf32, #tpu.memory_space<vmem>>, vector<8x128xf32>
    tpu.vector_store %arg10[%c56, %c0_83], %180 {strides = array<i32>} : memref<64x128xf32, #tpu.memory_space<vmem>>, vector<8x128xf32>,
    %c0_84 = arith.constant 0 : index
    %c0_85 = arith.constant 0 : index
    %182 = vector.load %arg8[%c0_84, %c0_85] : memref<8x128xf32, #tpu.memory_space<vmem>>, vector<8x128xf32>
    tpu.vector_store %arg8[%c0_84, %c0_85], %180 {strides = array<i32>} : memref<8x128xf32, #tpu.memory_space<vmem>>, vector<8x128xf32>,
    %c0_86 = arith.constant 0 : index
    %c0_87 = arith.constant 0 : index
    %183 = vector.load %arg9[%c0_86, %c0_87] : memref<8x128xf32, #tpu.memory_space<vmem>>, vector<8x128xf32>
    tpu.vector_store %arg9[%c0_86, %c0_87], %178 {strides = array<i32>} : memref<8x128xf32, #tpu.memory_space<vmem>>, vector<8x128xf32>,
    %c0_88 = arith.constant 0 : index
    %c0_89 = arith.constant 0 : index
    %184 = vector.load %arg10[%c0_88, %c0_89] : memref<64x128xf32, #tpu.memory_space<vmem>>, vector<64x128xf32>
    %c0_90 = arith.constant 0 : index
    %c0_91 = arith.constant 0 : index
    %185 = vector.load %arg5[%c0_90, %c0_91] : memref<128x128xf32, #tpu.memory_space<vmem>>, vector<128x128xf32>
    %cst_92 = arith.constant dense<0.000000e+00> : vector<64x128xf32>
    %186 = tpu.matmul %184, %185, %cst_92 {dimension_numbers = #tpu.dot_dimension_numbers<[1], [0], [0], [1], [0, 0, 1, 1], [], []>} : vector<64x128xf32>, vector<128x128xf32>, vector<64x128xf32> -> vector<64x128xf32>
    %c0_93 = arith.constant 0 : index
    %c0_94 = arith.constant 0 : index
    %187 = vector.load %arg6[%c0_93, %c0_94] : memref<1x128xf32, #tpu.memory_space<vmem>>, vector<1x128xf32>
    %188 = vector.broadcast %187 : vector<1x128xf32> to vector<64x128xf32>
    %189 = arith.addf %186, %188 : vector<64x128xf32>
    %190 = vector.shape_cast %189 : vector<64x128xf32> to vector<8x8x128xf32>
    %c0_95 = arith.constant 0 : index
    %c0_96 = arith.constant 0 : index
    %c0_97 = arith.constant 0 : index
    %191 = vector.load %arg7[%c0_95, %c0_96, %c0_97] : memref<8x8x128xf32, #tpu.memory_space<vmem>>, vector<8x8x128xf32>
    tpu.vector_store %arg7[%c0_95, %c0_96, %c0_97], %190 {strides = array<i32>} : memref<8x8x128xf32, #tpu.memory_space<vmem>>, vector<8x8x128xf32>,
    return
  }
  func.func @transform_0(%arg0: i32) -> (i32, i32, i32) {
    %c0_i32 = arith.constant 0 : i32
    %c0_i32_0 = arith.constant 0 : i32
    %c0_i32_1 = arith.constant 0 : i32
    return %c0_i32, %arg0, %c0_i32_0 : i32, i32, i32
  }
  func.func @transform_1(%arg0: i32) -> (i32, i32) {
    %c0_i32 = arith.constant 0 : i32
    %c0_i32_0 = arith.constant 0 : i32
    return %arg0, %c0_i32 : i32, i32
  }
  func.func @transform_2(%arg0: i32) -> (i32, i32) {
    %c0_i32 = arith.constant 0 : i32
    %c0_i32_0 = arith.constant 0 : i32
    return %arg0, %c0_i32 : i32, i32
  }
  func.func @transform_3(%arg0: i32) -> (i32, i32) {
    %c0_i32 = arith.constant 0 : i32
    %c0_i32_0 = arith.constant 0 : i32
    %c0_i32_1 = arith.constant 0 : i32
    return %c0_i32, %c0_i32_0 : i32, i32
  }
  func.func @transform_4(%arg0: i32) -> (i32, i32) {
    %c0_i32 = arith.constant 0 : i32
    %c0_i32_0 = arith.constant 0 : i32
    %c0_i32_1 = arith.constant 0 : i32
    return %c0_i32, %c0_i32_0 : i32, i32
  }
  func.func @transform_5(%arg0: i32) -> (i32, i32) {
    %c0_i32 = arith.constant 0 : i32
    %c0_i32_0 = arith.constant 0 : i32
    %c0_i32_1 = arith.constant 0 : i32
    return %c0_i32, %c0_i32_0 : i32, i32
  }
  func.func @transform_6(%arg0: i32) -> (i32, i32, i32) {
    %c0_i32 = arith.constant 0 : i32
    %c0_i32_0 = arith.constant 0 : i32
    %c0_i32_1 = arith.constant 0 : i32
    return %c0_i32, %arg0, %c0_i32_0 : i32, i32, i32
  }
  func.func @transform_7(%arg0: i32) -> (i32, i32) {
    %c0_i32 = arith.constant 0 : i32
    %c0_i32_0 = arith.constant 0 : i32
    return %arg0, %c0_i32 : i32, i32
  }
  func.func @transform_8(%arg0: i32) -> (i32, i32) {
    %c0_i32 = arith.constant 0 : i32
    %c0_i32_0 = arith.constant 0 : i32
    return %arg0, %c0_i32 : i32, i32
  }
}

</mosaic_0001>

<llo_original>
// kernel: tpu_custom_call.1
$region0: #{tpu_custom_call.1}
  #allocation0 [shape = 'u32[]', space=smem, size = 0x4, offset = 0x4, fixed_abs, tag = 'smem constant byte address 0x4 - core index']
  #allocation1 [shape = 'u32[144,128]{1,0:T(1,128)}', space=vmem, size = 0x12000, scoped, tag = 'internal scratch']
  #allocation2 [shape = 'f32[64,128]{1,0:T(8,128)}', space=vmem, size = 0x8000, scoped, tag = 'scratch operand']
  %s0 = inlined_call_operand.hbm [shape: f32[8,8,128], index: 0, kind: input, shape index: {}]
  %s1 = inlined_call_operand.hbm [shape: f32[8,128], index: 1, kind: input, shape index: {}]
  %s2 = inlined_call_operand.hbm [shape: f32[8,128], index: 2, kind: input, shape index: {}]
  %s3 = inlined_call_operand.hbm [shape: f32[128,128], index: 3, kind: input, shape index: {}]
  %s4 = inlined_call_operand.hbm [shape: f32[128,128], index: 4, kind: input, shape index: {}]
  %s5 = inlined_call_operand.vmem [shape: f32[1,128], index: 5, kind: input, shape index: {}]
  %s6 = inlined_call_operand.hbm [shape: f32[8,8,128], index: 6, kind: output, shape index: {0}]
  %s7 = inlined_call_operand.hbm [shape: f32[8,128], index: 7, kind: output, shape index: {1}]
  %s8 = inlined_call_operand.hbm [shape: f32[8,128], index: 8, kind: output, shape index: {2}]
  %9 = xla_tuple %s6, %s7, %s8
  %s10 = sld [smem:[#allocation0]]
  $region70: #{tpu_custom_call.1} parent=0
    _
  %s12 = ssub.s32 1, %s10
  %s13 = scalar_select 0, %s12, %s10
  $region1: #{tpu_custom_call.1} parent=0
    #allocation3 [shape = 'u8[32768]{0}', space=vmem, size = 0x8000, scoped, tag = 'input window, operand 0, single buffered']
    #allocation4 [shape = 's32[1]{0}', space=sflag, size = 0x4, scoped, tag = 'scoped memory for tpu_custom_call.1']
    #allocation5 [shape = 's32[1]{0}', space=sflag, size = 0x4, scoped, tag = 'scoped memory for tpu_custom_call.1']
    #allocation6 [shape = 'u8[4096]{0}', space=vmem, size = 0x1000, scoped, tag = 'input window, operand 1, single buffered']
    #allocation7 [shape = 's32[1]{0}', space=sflag, size = 0x4, scoped, tag = 'scoped memory for tpu_custom_call.1']
    #allocation8 [shape = 'u8[4096]{0}', space=vmem, size = 0x1000, scoped, tag = 'input window, operand 2, single buffered']
    #allocation9 [shape = 'u8[65536]{0}', space=vmem, size = 0x10000, scoped, tag = 'input window, operand 3, single buffered']
    #allocation10 [shape = 's32[1]{0}', space=sflag, size = 0x4, scoped, tag = 'scoped memory for tpu_custom_call.1']
    #allocation11 [shape = 'u8[65536]{0}', space=vmem, size = 0x10000, scoped, tag = 'input window, operand 4, single buffered']
    #allocation12 [shape = 'u8[32768]{0}', space=vmem, size = 0x8000, scoped, tag = 'output window, operand 0, single buffered']
    #allocation13 [shape = 'u8[4096]{0}', space=vmem, size = 0x1000, scoped, tag = 'output window, operand 1, single buffered']
    #allocation14 [shape = 's32[1]{0}', space=sflag, size = 0x4, scoped, tag = 'scoped memory for tpu_custom_call.1']
    #allocation15 [shape = 'u8[4096]{0}', space=vmem, size = 0x1000, scoped, tag = 'output window, operand 2, single buffered']
    %14 = vsyncpa [#allocation4], 0
    %15 = vsyncpa [#allocation7], 0
    %16 = vsyncpa [#allocation10], 0
    %17 = vsyncpa [#allocation5], 0
    %18 = vsyncpa [#allocation14], 0
    // Predicated region
    $region2: #{tpu_custom_call.1} parent=1 // pred_check
      _
    $region3: #{tpu_custom_call.1} parent=1 // pred_check_branch
      %20 = sbr.rel (0) target = $region5
    $region4: #{tpu_custom_call.1} parent=1 // pred_region
      %s22 = ssub.s32 1024, 1024
      %23 = vsyncadd [#allocation4], %s22
      %s24 = sshll.u32 [#allocation3], 4
      %s25 = int_to_ptr.vmem [resolvable:$true] %s24
      %30 = dma.hbm_to_vmem [thread:$0]  %s0, 1024, %s25, [#allocation4], 128, 128, 8
    $region5: #{tpu_custom_call.1} parent=1 // pred_fallthru
      _
    // Predicated region
    $region6: #{tpu_custom_call.1} parent=1 // pred_check
      _
    $region7: #{tpu_custom_call.1} parent=1 // pred_check_branch
      %32 = sbr.rel (0) target = $region9
    $region8: #{tpu_custom_call.1} parent=1 // pred_region
      %s34 = ssub.s32 128, 128
      %35 = vsyncadd [#allocation7], %s34
      %s37 = sshll.u32 [#allocation6], 4
      %s38 = int_to_ptr.vmem [resolvable:$true] %s37
      %40 = dma.hbm_to_vmem [thread:$0]  %s1, 128, %s38, [#allocation7]
    $region9: #{tpu_custom_call.1} parent=1 // pred_fallthru
      _
    // Predicated region
    $region10: #{tpu_custom_call.1} parent=1 // pred_check
      _
    $region11: #{tpu_custom_call.1} parent=1 // pred_check_branch
      %42 = sbr.rel (0) target = $region13
    $region12: #{tpu_custom_call.1} parent=1 // pred_region
      %s44 = ssub.s32 128, 128
      %45 = vsyncadd [#allocation7], %s44
      %s47 = sshll.u32 [#allocation8], 4
      %s48 = int_to_ptr.vmem [resolvable:$true] %s47
      %50 = dma.hbm_to_vmem [thread:$0]  %s2, 128, %s48, [#allocation7]
    $region13: #{tpu_custom_call.1} parent=1 // pred_fallthru
      _
    // Predicated region
    $region14: #{tpu_custom_call.1} parent=1 // pred_check
      _
    $region15: #{tpu_custom_call.1} parent=1 // pred_check_branch
      %52 = sbr.rel (0) target = $region17
    $region16: #{tpu_custom_call.1} parent=1 // pred_region
      %s54 = ssub.s32 2048, 2048
      %55 = vsyncadd [#allocation10], %s54
      %s56 = sshll.u32 [#allocation9], 4
      %s57 = int_to_ptr.vmem [resolvable:$true] %s56
      %62 = dma.hbm_to_vmem [thread:$0]  %s3, 2048, %s57, [#allocation10], 128, 128, 8
    $region17: #{tpu_custom_call.1} parent=1 // pred_fallthru
      _
    // Predicated region
    $region18: #{tpu_custom_call.1} parent=1 // pred_check
      _
    $region19: #{tpu_custom_call.1} parent=1 // pred_check_branch
      %64 = sbr.rel (0) target = $region21
    $region20: #{tpu_custom_call.1} parent=1 // pred_region
      %s66 = ssub.s32 2048, 2048
      %67 = vsyncadd [#allocation10], %s66
      %s68 = sshll.u32 [#allocation11], 4
      %s69 = int_to_ptr.vmem [resolvable:$true] %s68
      %74 = dma.hbm_to_vmem [thread:$0]  %s4, 2048, %s69, [#allocation10], 128, 128, 8
    $region21: #{tpu_custom_call.1} parent=1 // pred_fallthru
      _
    // Predicated region
    $region22: #{tpu_custom_call.1} parent=1 // pred_check
      _
    $region23: #{tpu_custom_call.1} parent=1 // pred_check_branch
      %76 = sbr.rel (0) target = $region25
    $region24: #{tpu_custom_call.1} parent=1 // pred_region
      _
    $region25: #{tpu_custom_call.1} parent=1 // pred_fallthru
      _
    // Predicated region
    $region26: #{tpu_custom_call.1} parent=1 // pred_check
      _
    $region27: #{tpu_custom_call.1} parent=1 // pred_check_branch
      %78 = sbr.rel (0) target = $region29
    $region28: #{tpu_custom_call.1} parent=1 // pred_region
      %79 = dma.done [#allocation4], 1024
    $region29: #{tpu_custom_call.1} parent=1 // pred_fallthru
      _
    // Predicated region
    $region30: #{tpu_custom_call.1} parent=1 // pred_check
      _
    $region31: #{tpu_custom_call.1} parent=1 // pred_check_branch
      %81 = sbr.rel (0) target = $region33
    $region32: #{tpu_custom_call.1} parent=1 // pred_region
      %82 = dma.done [#allocation7], 128
    $region33: #{tpu_custom_call.1} parent=1 // pred_fallthru
      _
    // Predicated region
    $region34: #{tpu_custom_call.1} parent=1 // pred_check
      _
    $region35: #{tpu_custom_call.1} parent=1 // pred_check_branch
      %84 = sbr.rel (0) target = $region37
    $region36: #{tpu_custom_call.1} parent=1 // pred_region
      %85 = dma.done [#allocation7], 128
    $region37: #{tpu_custom_call.1} parent=1 // pred_fallthru
      _
    // Predicated region
    $region38: #{tpu_custom_call.1} parent=1 // pred_check
      _
    $region39: #{tpu_custom_call.1} parent=1 // pred_check_branch
      %87 = sbr.rel (0) target = $region41
    $region40: #{tpu_custom_call.1} parent=1 // pred_region
      %88 = dma.done [#allocation10], 2048
    $region41: #{tpu_custom_call.1} parent=1 // pred_fallthru
      _
    // Predicated region
    $region42: #{tpu_custom_call.1} parent=1 // pred_check
      _
    $region43: #{tpu_custom_call.1} parent=1 // pred_check_branch
      %90 = sbr.rel (0) target = $region45
    $region44: #{tpu_custom_call.1} parent=1 // pred_region
      %91 = dma.done [#allocation10], 2048
    $region45: #{tpu_custom_call.1} parent=1 // pred_fallthru
      _
    %v92 = vld [vmem:[#allocation9] sm:$0xff]
    %v93 = vld [vmem:[#allocation9 + $0x8] sm:$0xff]
    %v94 = vld [vmem:[#allocation9 + $0x10] sm:$0xff]
    %v95 = vld [vmem:[#allocation9 + $0x18] sm:$0xff]
    %v96 = vld [vmem:[#allocation9 + $0x20] sm:$0xff]
    %v97 = vld [vmem:[#allocation9 + $0x28] sm:$0xff]
    %v98 = vld [vmem:[#allocation9 + $0x30] sm:$0xff]
    %v99 = vld [vmem:[#allocation9 + $0x38] sm:$0xff]
    %v100 = vld [vmem:[#allocation9 + $0x40] sm:$0xff]
    %v101 = vld [vmem:[#allocation9 + $0x48] sm:$0xff]
    %v102 = vld [vmem:[#allocation9 + $0x50] sm:$0xff]
    %v103 = vld [vmem:[#allocation9 + $0x58] sm:$0xff]
    %v104 = vld [vmem:[#allocation9 + $0x60] sm:$0xff]
    %v105 = vld [vmem:[#allocation9 + $0x68] sm:$0xff]
    %v106 = vld [vmem:[#allocation9 + $0x70] sm:$0xff]
    %v107 = vld [vmem:[#allocation9 + $0x78] sm:$0xff]
    %v108 = vlaneseq
    %v109 = vand.u32 %v108, 127
    %vm110 = vcmp.lt.s32.totalorder %v109, 96
    %v111 = vld [vmem:[#allocation6] sm:$0xff]
    %v112 = vld [vmem:[#allocation8] sm:$0xff]
    %v113 = vld [vmem:[#allocation3] sm:$0xff]
    %114 = vmatprep.subr.mxu0 0.0
    %115 = vmatpush1.msra.mxu0 %v92
    %116 = vmatprep.subr.mxu0 0.0
    %117 = vmatpush1.msra.mxu0 %v93
    %118 = vmatprep.subr.mxu0 0.0
    %119 = vmatpush1.msra.mxu0 %v94
    %120 = vmatprep.subr.mxu0 0.0
    %121 = vmatpush1.msra.mxu0 %v95
    %122 = vmatprep.subr.mxu0 0.0
    %123 = vmatpush1.msra.mxu0 %v96
    %124 = vmatprep.subr.mxu0 0.0
    %125 = vmatpush1.msra.mxu0 %v97
    %126 = vmatprep.subr.mxu0 0.0
    %127 = vmatpush1.msra.mxu0 %v98
    %128 = vmatprep.subr.mxu0 0.0
    %129 = vmatpush1.msra.mxu0 %v99
    %130 = vmatprep.subr.mxu0 0.0
    %131 = vmatpush1.msra.mxu0 %v100
    %132 = vmatprep.subr.mxu0 0.0
    %133 = vmatpush1.msra.mxu0 %v101
    %134 = vmatprep.subr.mxu0 0.0
    %135 = vmatpush1.msra.mxu0 %v102
    %136 = vmatprep.subr.mxu0 0.0
    %137 = vmatpush1.msra.mxu0 %v103
    %138 = vmatprep.subr.mxu0 0.0
    %139 = vmatpush1.msra.mxu0 %v104
    %140 = vmatprep.subr.mxu0 0.0
    %141 = vmatpush1.msra.mxu0 %v105
    %142 = vmatprep.subr.mxu0 0.0
    %143 = vmatpush1.msra.mxu0 %v106
    %144 = vmatprep.subr.mxu0 0.0
    %145 = vmatpush1.msra.mxu0 %v107
    %146 = vmatprep.subr.mxu0 0.0
    %147 = vmatpush1.msra.mxu0 0.0
    %148 = vmatprep.subr.mxu0 0.0
    %149 = vmatpush1.msra.mxu0 0.0
    %150 = vmatprep.subr.mxu0 0.0
    %151 = vmatpush1.msra.mxu0 0.0
    %152 = vmatprep.subr.mxu0 0.0
    %153 = vmatpush1.msra.mxu0 0.0
    %154 = vmatprep.subr.mxu0 0.0
    %155 = vmatpush1.msra.mxu0 0.0
    %156 = vmatprep.subr.mxu0 0.0
    %157 = vmatpush1.msra.mxu0 0.0
    %158 = vmatprep.subr.mxu0 0.0
    %159 = vmatpush1.msra.mxu0 0.0
    %160 = vmatprep.subr.mxu0 0.0
    %161 = vmatpush1.msra.mxu0 0.0
    %162 = vmatprep.subr.mxu0 0.0
    %163 = vmatpush1.msra.mxu0 0.0
    %164 = vmatprep.subr.mxu0 0.0
    %165 = vmatpush1.msra.mxu0 0.0
    %166 = vmatprep.subr.mxu0 0.0
    %167 = vmatpush1.msra.mxu0 0.0
    %168 = vmatprep.subr.mxu0 0.0
    %169 = vmatpush1.msra.mxu0 0.0
    %170 = vmatprep.subr.mxu0 0.0
    %171 = vmatpush1.msra.mxu0 0.0
    %172 = vmatprep.subr.mxu0 0.0
    %173 = vmatpush1.msra.mxu0 0.0
    %174 = vmatprep.subr.mxu0 0.0
    %175 = vmatpush1.msra.mxu0 0.0
    %176 = vmatprep.subr.mxu0 0.0
    %177 = vmatpush1.msra.mxu0 0.0
    %178 = vmatprep.mubr.f32.mxu0 0.0
    %179 = vmatmul.mubr.f32.gmra.mrb[0].mxu0 %v111
    %v180 = vpop.f32.mrb[0].mxu0
    %v181 = vadd.f32 0.0, %v180
    %v182 = vpop.f32.mrb[0].mxu0
    %183 = vdwg.mxu0
    %v184 = vadd.f32 %v113, %v181
    %v185 = vmul.f32 %v184, 0.5
    %v186 = vsel %vm110, %v185, %v184
    %v187 = vtanh.pop %v186
    %v188 = vadd.f32 %v187, 1.0
    %v189 = vmul.f32 %v188, 0.5
    %v190 = vsel %vm110, %v189, %v187
    %191 = vrot.lane.b32.xlu0 %v190, 96
    %v192 = vpop.permute.xlu0 %191
    %193 = vrot.lane.b32.xlu0 %v190, 64
    %v194 = vpop.permute.xlu0 %193
    %195 = vrot.lane.b32.xlu0 %v190, 32
    %v196 = vpop.permute.xlu0 %195
    %v197 = vmul.f32 %v192, %v112
    %v198 = vmul.f32 %v190, %v196
    %v199 = vadd.f32 %v197, %v198
    %v200 = vtanh.pop %v199
    %v201 = vmul.f32 %v194, %v200
    %202 = vst [vmem:[#allocation2] sm:$0xff] %v201
    %s203 = scalar_lea.vmem [#allocation3], 8
    %v204 = vld [vmem:[%s203] sm:$0xff]
    %205 = vmatprep.subr.mxu0 0.0
    %206 = vmatpush1.msra.mxu0 %v92
    %207 = vmatprep.subr.mxu0 0.0
    %208 = vmatpush1.msra.mxu0 %v93
    %209 = vmatprep.subr.mxu0 0.0
    %210 = vmatpush1.msra.mxu0 %v94
    %211 = vmatprep.subr.mxu0 0.0
    %212 = vmatpush1.msra.mxu0 %v95
    %213 = vmatprep.subr.mxu0 0.0
    %214 = vmatpush1.msra.mxu0 %v96
    %215 = vmatprep.subr.mxu0 0.0
    %216 = vmatpush1.msra.mxu0 %v97
    %217 = vmatprep.subr.mxu0 0.0
    %218 = vmatpush1.msra.mxu0 %v98
    %219 = vmatprep.subr.mxu0 0.0
    %220 = vmatpush1.msra.mxu0 %v99
    %221 = vmatprep.subr.mxu0 0.0
    %222 = vmatpush1.msra.mxu0 %v100
    %223 = vmatprep.subr.mxu0 0.0
    %224 = vmatpush1.msra.mxu0 %v101
    %225 = vmatprep.subr.mxu0 0.0
    %226 = vmatpush1.msra.mxu0 %v102
    %227 = vmatprep.subr.mxu0 0.0
    %228 = vmatpush1.msra.mxu0 %v103
    %229 = vmatprep.subr.mxu0 0.0
    %230 = vmatpush1.msra.mxu0 %v104
    %231 = vmatprep.subr.mxu0 0.0
    %232 = vmatpush1.msra.mxu0 %v105
    %233 = vmatprep.subr.mxu0 0.0
    %234 = vmatpush1.msra.mxu0 %v106
    %235 = vmatprep.subr.mxu0 0.0
    %236 = vmatpush1.msra.mxu0 %v107
    %237 = vmatprep.subr.mxu0 0.0
    %238 = vmatpush1.msra.mxu0 0.0
    %239 = vmatprep.subr.mxu0 0.0
    %240 = vmatpush1.msra.mxu0 0.0
    %241 = vmatprep.subr.mxu0 0.0
    %242 = vmatpush1.msra.mxu0 0.0
    %243 = vmatprep.subr.mxu0 0.0
    %244 = vmatpush1.msra.mxu0 0.0
    %245 = vmatprep.subr.mxu0 0.0
    %246 = vmatpush1.msra.mxu0 0.0
    %247 = vmatprep.subr.mxu0 0.0
    %248 = vmatpush1.msra.mxu0 0.0
    %249 = vmatprep.subr.mxu0 0.0
    %250 = vmatpush1.msra.mxu0 0.0
    %251 = vmatprep.subr.mxu0 0.0
    %252 = vmatpush1.msra.mxu0 0.0
    %253 = vmatprep.subr.mxu0 0.0
    %254 = vmatpush1.msra.mxu0 0.0
    %255 = vmatprep.subr.mxu0 0.0
    %256 = vmatpush1.msra.mxu0 0.0
    %257 = vmatprep.subr.mxu0 0.0
    %258 = vmatpush1.msra.mxu0 0.0
    %259 = vmatprep.subr.mxu0 0.0
    %260 = vmatpush1.msra.mxu0 0.0
    %261 = vmatprep.subr.mxu0 0.0
    %262 = vmatpush1.msra.mxu0 0.0
    %263 = vmatprep.subr.mxu0 0.0
    %264 = vmatpush1.msra.mxu0 0.0
    %265 = vmatprep.subr.mxu0 0.0
    %266 = vmatpush1.msra.mxu0 0.0
    %267 = vmatprep.subr.mxu0 0.0
    %268 = vmatpush1.msra.mxu0 0.0
    %269 = vmatprep.mubr.f32.mxu0 0.0
    %270 = vmatmul.mubr.f32.gmra.mrb[0].mxu0 %v201
    %v271 = vpop.f32.mrb[0].mxu0
    %v272 = vadd.f32 0.0, %v271
    %v273 = vpop.f32.mrb[0].mxu0
    %274 = vdwg.mxu0
    %v275 = vadd.f32 %v204, %v272
    %v276 = vmul.f32 %v275, 0.5
    %v277 = vsel %vm110, %v276, %v275
    %v278 = vtanh.pop %v277
    %v279 = vadd.f32 %v278, 1.0
    %v280 = vmul.f32 %v279, 0.5
    %v281 = vsel %vm110, %v280, %v278
    %282 = vrot.lane.b32.xlu0 %v281, 96
    %v283 = vpop.permute.xlu0 %282
    %284 = vrot.lane.b32.xlu0 %v281, 64
    %v285 = vpop.permute.xlu0 %284
    %286 = vrot.lane.b32.xlu0 %v281, 32
    %v287 = vpop.permute.xlu0 %286
    %v288 = vmul.f32 %v283, %v199
    %v289 = vmul.f32 %v281, %v287
    %v290 = vadd.f32 %v288, %v289
    %v291 = vtanh.pop %v290
    %v292 = vmul.f32 %v285, %v291
    %293 = vst [vmem:[#allocation2 + $0x8] sm:$0xff] %v292
    %s294 = scalar_lea.vmem [#allocation3], 16
    %v295 = vld [vmem:[%s294] sm:$0xff]
    %296 = vmatprep.subr.mxu0 0.0
    %297 = vmatpush1.msra.mxu0 %v92
    %298 = vmatprep.subr.mxu0 0.0
    %299 = vmatpush1.msra.mxu0 %v93
    %300 = vmatprep.subr.mxu0 0.0
    %301 = vmatpush1.msra.mxu0 %v94
    %302 = vmatprep.subr.mxu0 0.0
    %303 = vmatpush1.msra.mxu0 %v95
    %304 = vmatprep.subr.mxu0 0.0
    %305 = vmatpush1.msra.mxu0 %v96
    %306 = vmatprep.subr.mxu0 0.0
    %307 = vmatpush1.msra.mxu0 %v97
    %308 = vmatprep.subr.mxu0 0.0
    %309 = vmatpush1.msra.mxu0 %v98
    %310 = vmatprep.subr.mxu0 0.0
    %311 = vmatpush1.msra.mxu0 %v99
    %312 = vmatprep.subr.mxu0 0.0
    %313 = vmatpush1.msra.mxu0 %v100
    %314 = vmatprep.subr.mxu0 0.0
    %315 = vmatpush1.msra.mxu0 %v101
    %316 = vmatprep.subr.mxu0 0.0
    %317 = vmatpush1.msra.mxu0 %v102
    %318 = vmatprep.subr.mxu0 0.0
    %319 = vmatpush1.msra.mxu0 %v103
    %320 = vmatprep.subr.mxu0 0.0
    %321 = vmatpush1.msra.mxu0 %v104
    %322 = vmatprep.subr.mxu0 0.0
    %323 = vmatpush1.msra.mxu0 %v105
    %324 = vmatprep.subr.mxu0 0.0
    %325 = vmatpush1.msra.mxu0 %v106
    %326 = vmatprep.subr.mxu0 0.0
    %327 = vmatpush1.msra.mxu0 %v107
    %328 = vmatprep.subr.mxu0 0.0
    %329 = vmatpush1.msra.mxu0 0.0
    %330 = vmatprep.subr.mxu0 0.0
    %331 = vmatpush1.msra.mxu0 0.0
    %332 = vmatprep.subr.mxu0 0.0
    %333 = vmatpush1.msra.mxu0 0.0
    %334 = vmatprep.subr.mxu0 0.0
    %335 = vmatpush1.msra.mxu0 0.0
    %336 = vmatprep.subr.mxu0 0.0
    %337 = vmatpush1.msra.mxu0 0.0
    %338 = vmatprep.subr.mxu0 0.0
    %339 = vmatpush1.msra.mxu0 0.0
    %340 = vmatprep.subr.mxu0 0.0
    %341 = vmatpush1.msra.mxu0 0.0
    %342 = vmatprep.subr.mxu0 0.0
    %343 = vmatpush1.msra.mxu0 0.0
    %344 = vmatprep.subr.mxu0 0.0
    %345 = vmatpush1.msra.mxu0 0.0
    %346 = vmatprep.subr.mxu0 0.0
    %347 = vmatpush1.msra.mxu0 0.0
    %348 = vmatprep.subr.mxu0 0.0
    %349 = vmatpush1.msra.mxu0 0.0
    %350 = vmatprep.subr.mxu0 0.0
    %351 = vmatpush1.msra.mxu0 0.0
    %352 = vmatprep.subr.mxu0 0.0
    %353 = vmatpush1.msra.mxu0 0.0
    %354 = vmatprep.subr.mxu0 0.0
    %355 = vmatpush1.msra.mxu0 0.0
    %356 = vmatprep.subr.mxu0 0.0
    %357 = vmatpush1.msra.mxu0 0.0
    %358 = vmatprep.subr.mxu0 0.0
    %359 = vmatpush1.msra.mxu0 0.0
    %360 = vmatprep.mubr.f32.mxu0 0.0
    %361 = vmatmul.mubr.f32.gmra.mrb[0].mxu0 %v292
    %v362 = vpop.f32.mrb[0].mxu0
    %v363 = vadd.f32 0.0, %v362
    %v364 = vpop.f32.mrb[0].mxu0
    %365 = vdwg.mxu0
    %v366 = vadd.f32 %v295, %v363
    %v367 = vmul.f32 %v366, 0.5
    %v368 = vsel %vm110, %v367, %v366
    %v369 = vtanh.pop %v368
    %v370 = vadd.f32 %v369, 1.0
    %v371 = vmul.f32 %v370, 0.5
    %v372 = vsel %vm110, %v371, %v369
    %373 = vrot.lane.b32.xlu0 %v372, 96
    %v374 = vpop.permute.xlu0 %373
    %375 = vrot.lane.b32.xlu0 %v372, 64
    %v376 = vpop.permute.xlu0 %375
    %377 = vrot.lane.b32.xlu0 %v372, 32
    %v378 = vpop.permute.xlu0 %377
    %v379 = vmul.f32 %v374, %v290
    %v380 = vmul.f32 %v372, %v378
    %v381 = vadd.f32 %v379, %v380
    %v382 = vtanh.pop %v381
    %v383 = vmul.f32 %v376, %v382
    %384 = vst [vmem:[#allocation2 + $0x10] sm:$0xff] %v383
    %s385 = scalar_lea.vmem [#allocation3], 24
    %v386 = vld [vmem:[%s385] sm:$0xff]
    %387 = vmatprep.subr.mxu0 0.0
    %388 = vmatpush1.msra.mxu0 %v92
    %389 = vmatprep.subr.mxu0 0.0
    %390 = vmatpush1.msra.mxu0 %v93
    %391 = vmatprep.subr.mxu0 0.0
    %392 = vmatpush1.msra.mxu0 %v94
    %393 = vmatprep.subr.mxu0 0.0
    %394 = vmatpush1.msra.mxu0 %v95
    %395 = vmatprep.subr.mxu0 0.0
    %396 = vmatpush1.msra.mxu0 %v96
    %397 = vmatprep.subr.mxu0 0.0
    %398 = vmatpush1.msra.mxu0 %v97
    %399 = vmatprep.subr.mxu0 0.0
    %400 = vmatpush1.msra.mxu0 %v98
    %401 = vmatprep.subr.mxu0 0.0
    %402 = vmatpush1.msra.mxu0 %v99
    %403 = vmatprep.subr.mxu0 0.0
    %404 = vmatpush1.msra.mxu0 %v100
    %405 = vmatprep.subr.mxu0 0.0
    %406 = vmatpush1.msra.mxu0 %v101
    %407 = vmatprep.subr.mxu0 0.0
    %408 = vmatpush1.msra.mxu0 %v102
    %409 = vmatprep.subr.mxu0 0.0
    %410 = vmatpush1.msra.mxu0 %v103
    %411 = vmatprep.subr.mxu0 0.0
    %412 = vmatpush1.msra.mxu0 %v104
    %413 = vmatprep.subr.mxu0 0.0
    %414 = vmatpush1.msra.mxu0 %v105
    %415 = vmatprep.subr.mxu0 0.0
    %416 = vmatpush1.msra.mxu0 %v106
    %417 = vmatprep.subr.mxu0 0.0
    %418 = vmatpush1.msra.mxu0 %v107
    %419 = vmatprep.subr.mxu0 0.0
    %420 = vmatpush1.msra.mxu0 0.0
    %421 = vmatprep.subr.mxu0 0.0
    %422 = vmatpush1.msra.mxu0 0.0
    %423 = vmatprep.subr.mxu0 0.0
    %424 = vmatpush1.msra.mxu0 0.0
    %425 = vmatprep.subr.mxu0 0.0
    %426 = vmatpush1.msra.mxu0 0.0
    %427 = vmatprep.subr.mxu0 0.0
    %428 = vmatpush1.msra.mxu0 0.0
    %429 = vmatprep.subr.mxu0 0.0
    %430 = vmatpush1.msra.mxu0 0.0
    %431 = vmatprep.subr.mxu0 0.0
    %432 = vmatpush1.msra.mxu0 0.0
    %433 = vmatprep.subr.mxu0 0.0
    %434 = vmatpush1.msra.mxu0 0.0
    %435 = vmatprep.subr.mxu0 0.0
    %436 = vmatpush1.msra.mxu0 0.0
    %437 = vmatprep.subr.mxu0 0.0
    %438 = vmatpush1.msra.mxu0 0.0
    %439 = vmatprep.subr.mxu0 0.0
    %440 = vmatpush1.msra.mxu0 0.0
    %441 = vmatprep.subr.mxu0 0.0
    %442 = vmatpush1.msra.mxu0 0.0
    %443 = vmatprep.subr.mxu0 0.0
    %444 = vmatpush1.msra.mxu0 0.0
    %445 = vmatprep.subr.mxu0 0.0
    %446 = vmatpush1.msra.mxu0 0.0
    %447 = vmatprep.subr.mxu0 0.0
    %448 = vmatpush1.msra.mxu0 0.0
    %449 = vmatprep.subr.mxu0 0.0
    %450 = vmatpush1.msra.mxu0 0.0
    %451 = vmatprep.mubr.f32.mxu0 0.0
    %452 = vmatmul.mubr.f32.gmra.mrb[0].mxu0 %v383
    %v453 = vpop.f32.mrb[0].mxu0
    %v454 = vadd.f32 0.0, %v453
    %v455 = vpop.f32.mrb[0].mxu0
    %456 = vdwg.mxu0
    %v457 = vadd.f32 %v386, %v454
    %v458 = vmul.f32 %v457, 0.5
    %v459 = vsel %vm110, %v458, %v457
    %v460 = vtanh.pop %v459
    %v461 = vadd.f32 %v460, 1.0
    %v462 = vmul.f32 %v461, 0.5
    %v463 = vsel %vm110, %v462, %v460
    %464 = vrot.lane.b32.xlu0 %v463, 96
    %v465 = vpop.permute.xlu0 %464
    %466 = vrot.lane.b32.xlu0 %v463, 64
    %v467 = vpop.permute.xlu0 %466
    %468 = vrot.lane.b32.xlu0 %v463, 32
    %v469 = vpop.permute.xlu0 %468
    %v470 = vmul.f32 %v465, %v381
    %v471 = vmul.f32 %v463, %v469
    %v472 = vadd.f32 %v470, %v471
    %v473 = vtanh.pop %v472
    %v474 = vmul.f32 %v467, %v473
    %475 = vst [vmem:[#allocation2 + $0x18] sm:$0xff] %v474
    %s476 = scalar_lea.vmem [#allocation3], 32
    %v477 = vld [vmem:[%s476] sm:$0xff]
    %478 = vmatprep.subr.mxu0 0.0
    %479 = vmatpush1.msra.mxu0 %v92
    %480 = vmatprep.subr.mxu0 0.0
    %481 = vmatpush1.msra.mxu0 %v93
    %482 = vmatprep.subr.mxu0 0.0
    %483 = vmatpush1.msra.mxu0 %v94
    %484 = vmatprep.subr.mxu0 0.0
    %485 = vmatpush1.msra.mxu0 %v95
    %486 = vmatprep.subr.mxu0 0.0
    %487 = vmatpush1.msra.mxu0 %v96
    %488 = vmatprep.subr.mxu0 0.0
    %489 = vmatpush1.msra.mxu0 %v97
    %490 = vmatprep.subr.mxu0 0.0
    %491 = vmatpush1.msra.mxu0 %v98
    %492 = vmatprep.subr.mxu0 0.0
    %493 = vmatpush1.msra.mxu0 %v99
    %494 = vmatprep.subr.mxu0 0.0
    %495 = vmatpush1.msra.mxu0 %v100
    %496 = vmatprep.subr.mxu0 0.0
    %497 = vmatpush1.msra.mxu0 %v101
    %498 = vmatprep.subr.mxu0 0.0
    %499 = vmatpush1.msra.mxu0 %v102
    %500 = vmatprep.subr.mxu0 0.0
    %501 = vmatpush1.msra.mxu0 %v103
    %502 = vmatprep.subr.mxu0 0.0
    %503 = vmatpush1.msra.mxu0 %v104
    %504 = vmatprep.subr.mxu0 0.0
    %505 = vmatpush1.msra.mxu0 %v105
    %506 = vmatprep.subr.mxu0 0.0
    %507 = vmatpush1.msra.mxu0 %v106
    %508 = vmatprep.subr.mxu0 0.0
    %509 = vmatpush1.msra.mxu0 %v107
    %510 = vmatprep.subr.mxu0 0.0
    %511 = vmatpush1.msra.mxu0 0.0
    %512 = vmatprep.subr.mxu0 0.0
    %513 = vmatpush1.msra.mxu0 0.0
    %514 = vmatprep.subr.mxu0 0.0
    %515 = vmatpush1.msra.mxu0 0.0
    %516 = vmatprep.subr.mxu0 0.0
    %517 = vmatpush1.msra.mxu0 0.0
    %518 = vmatprep.subr.mxu0 0.0
    %519 = vmatpush1.msra.mxu0 0.0
    %520 = vmatprep.subr.mxu0 0.0
    %521 = vmatpush1.msra.mxu0 0.0
    %522 = vmatprep.subr.mxu0 0.0
    %523 = vmatpush1.msra.mxu0 0.0
    %524 = vmatprep.subr.mxu0 0.0
    %525 = vmatpush1.msra.mxu0 0.0
    %526 = vmatprep.subr.mxu0 0.0
    %527 = vmatpush1.msra.mxu0 0.0
    %528 = vmatprep.subr.mxu0 0.0
    %529 = vmatpush1.msra.mxu0 0.0
    %530 = vmatprep.subr.mxu0 0.0
    %531 = vmatpush1.msra.mxu0 0.0
    %532 = vmatprep.subr.mxu0 0.0
    %533 = vmatpush1.msra.mxu0 0.0
    %534 = vmatprep.subr.mxu0 0.0
    %535 = vmatpush1.msra.mxu0 0.0
    %536 = vmatprep.subr.mxu0 0.0
    %537 = vmatpush1.msra.mxu0 0.0
    %538 = vmatprep.subr.mxu0 0.0
    %539 = vmatpush1.msra.mxu0 0.0
    %540 = vmatprep.subr.mxu0 0.0
    %541 = vmatpush1.msra.mxu0 0.0
    %542 = vmatprep.mubr.f32.mxu0 0.0
    %543 = vmatmul.mubr.f32.gmra.mrb[0].mxu0 %v474
    %v544 = vpop.f32.mrb[0].mxu0
    %v545 = vadd.f32 0.0, %v544
    %v546 = vpop.f32.mrb[0].mxu0
    %547 = vdwg.mxu0
    %v548 = vadd.f32 %v477, %v545
    %v549 = vmul.f32 %v548, 0.5
    %v550 = vsel %vm110, %v549, %v548
    %v551 = vtanh.pop %v550
    %v552 = vadd.f32 %v551, 1.0
    %v553 = vmul.f32 %v552, 0.5
    %v554 = vsel %vm110, %v553, %v551
    %555 = vrot.lane.b32.xlu0 %v554, 96
    %v556 = vpop.permute.xlu0 %555
    %557 = vrot.lane.b32.xlu0 %v554, 64
    %v558 = vpop.permute.xlu0 %557
    %559 = vrot.lane.b32.xlu0 %v554, 32
    %v560 = vpop.permute.xlu0 %559
    %v561 = vmul.f32 %v556, %v472
    %v562 = vmul.f32 %v554, %v560
    %v563 = vadd.f32 %v561, %v562
    %v564 = vtanh.pop %v563
    %v565 = vmul.f32 %v558, %v564
    %566 = vst [vmem:[#allocation2 + $0x20] sm:$0xff] %v565
    %s567 = scalar_lea.vmem [#allocation3], 40
    %v568 = vld [vmem:[%s567] sm:$0xff]
    %569 = vmatprep.subr.mxu0 0.0
    %570 = vmatpush1.msra.mxu0 %v92
    %571 = vmatprep.subr.mxu0 0.0
    %572 = vmatpush1.msra.mxu0 %v93
    %573 = vmatprep.subr.mxu0 0.0
    %574 = vmatpush1.msra.mxu0 %v94
    %575 = vmatprep.subr.mxu0 0.0
    %576 = vmatpush1.msra.mxu0 %v95
    %577 = vmatprep.subr.mxu0 0.0
    %578 = vmatpush1.msra.mxu0 %v96
    %579 = vmatprep.subr.mxu0 0.0
    %580 = vmatpush1.msra.mxu0 %v97
    %581 = vmatprep.subr.mxu0 0.0
    %582 = vmatpush1.msra.mxu0 %v98
    %583 = vmatprep.subr.mxu0 0.0
    %584 = vmatpush1.msra.mxu0 %v99
    %585 = vmatprep.subr.mxu0 0.0
    %586 = vmatpush1.msra.mxu0 %v100
    %587 = vmatprep.subr.mxu0 0.0
    %588 = vmatpush1.msra.mxu0 %v101
    %589 = vmatprep.subr.mxu0 0.0
    %590 = vmatpush1.msra.mxu0 %v102
    %591 = vmatprep.subr.mxu0 0.0
    %592 = vmatpush1.msra.mxu0 %v103
    %593 = vmatprep.subr.mxu0 0.0
    %594 = vmatpush1.msra.mxu0 %v104
    %595 = vmatprep.subr.mxu0 0.0
    %596 = vmatpush1.msra.mxu0 %v105
    %597 = vmatprep.subr.mxu0 0.0
    %598 = vmatpush1.msra.mxu0 %v106
    %599 = vmatprep.subr.mxu0 0.0
    %600 = vmatpush1.msra.mxu0 %v107
    %601 = vmatprep.subr.mxu0 0.0
    %602 = vmatpush1.msra.mxu0 0.0
    %603 = vmatprep.subr.mxu0 0.0
    %604 = vmatpush1.msra.mxu0 0.0
    %605 = vmatprep.subr.mxu0 0.0
    %606 = vmatpush1.msra.mxu0 0.0
    %607 = vmatprep.subr.mxu0 0.0
    %608 = vmatpush1.msra.mxu0 0.0
    %609 = vmatprep.subr.mxu0 0.0
    %610 = vmatpush1.msra.mxu0 0.0
    %611 = vmatprep.subr.mxu0 0.0
    %612 = vmatpush1.msra.mxu0 0.0
    %613 = vmatprep.subr.mxu0 0.0
    %614 = vmatpush1.msra.mxu0 0.0
    %615 = vmatprep.subr.mxu0 0.0
    %616 = vmatpush1.msra.mxu0 0.0
    %617 = vmatprep.subr.mxu0 0.0
    %618 = vmatpush1.msra.mxu0 0.0
    %619 = vmatprep.subr.mxu0 0.0
    %620 = vmatpush1.msra.mxu0 0.0
    %621 = vmatprep.subr.mxu0 0.0
    %622 = vmatpush1.msra.mxu0 0.0
    %623 = vmatprep.subr.mxu0 0.0
    %624 = vmatpush1.msra.mxu0 0.0
    %625 = vmatprep.subr.mxu0 0.0
    %626 = vmatpush1.msra.mxu0 0.0
    %627 = vmatprep.subr.mxu0 0.0
    %628 = vmatpush1.msra.mxu0 0.0
    %629 = vmatprep.subr.mxu0 0.0
    %630 = vmatpush1.msra.mxu0 0.0
    %631 = vmatprep.subr.mxu0 0.0
    %632 = vmatpush1.msra.mxu0 0.0
    %633 = vmatprep.mubr.f32.mxu0 0.0
    %634 = vmatmul.mubr.f32.gmra.mrb[0].mxu0 %v565
    %v635 = vpop.f32.mrb[0].mxu0
    %v636 = vadd.f32 0.0, %v635
    %v637 = vpop.f32.mrb[0].mxu0
    %638 = vdwg.mxu0
    %v639 = vadd.f32 %v568, %v636
    %v640 = vmul.f32 %v639, 0.5
    %v641 = vsel %vm110, %v640, %v639
    %v642 = vtanh.pop %v641
    %v643 = vadd.f32 %v642, 1.0
    %v644 = vmul.f32 %v643, 0.5
    %v645 = vsel %vm110, %v644, %v642
    %646 = vrot.lane.b32.xlu0 %v645, 96
    %v647 = vpop.permute.xlu0 %646
    %648 = vrot.lane.b32.xlu0 %v645, 64
    %v649 = vpop.permute.xlu0 %648
    %650 = vrot.lane.b32.xlu0 %v645, 32
    %v651 = vpop.permute.xlu0 %650
    %v652 = vmul.f32 %v647, %v563
    %v653 = vmul.f32 %v645, %v651
    %v654 = vadd.f32 %v652, %v653
    %v655 = vtanh.pop %v654
    %v656 = vmul.f32 %v649, %v655
    %657 = vst [vmem:[#allocation2 + $0x28] sm:$0xff] %v656
    %s658 = scalar_lea.vmem [#allocation3], 48
    %v659 = vld [vmem:[%s658] sm:$0xff]
    %660 = vmatprep.subr.mxu0 0.0
    %661 = vmatpush1.msra.mxu0 %v92
    %662 = vmatprep.subr.mxu0 0.0
    %663 = vmatpush1.msra.mxu0 %v93
    %664 = vmatprep.subr.mxu0 0.0
    %665 = vmatpush1.msra.mxu0 %v94
    %666 = vmatprep.subr.mxu0 0.0
    %667 = vmatpush1.msra.mxu0 %v95
    %668 = vmatprep.subr.mxu0 0.0
    %669 = vmatpush1.msra.mxu0 %v96
    %670 = vmatprep.subr.mxu0 0.0
    %671 = vmatpush1.msra.mxu0 %v97
    %672 = vmatprep.subr.mxu0 0.0
    %673 = vmatpush1.msra.mxu0 %v98
    %674 = vmatprep.subr.mxu0 0.0
    %675 = vmatpush1.msra.mxu0 %v99
    %676 = vmatprep.subr.mxu0 0.0
    %677 = vmatpush1.msra.mxu0 %v100
    %678 = vmatprep.subr.mxu0 0.0
    %679 = vmatpush1.msra.mxu0 %v101
    %680 = vmatprep.subr.mxu0 0.0
    %681 = vmatpush1.msra.mxu0 %v102
    %682 = vmatprep.subr.mxu0 0.0
    %683 = vmatpush1.msra.mxu0 %v103
    %684 = vmatprep.subr.mxu0 0.0
    %685 = vmatpush1.msra.mxu0 %v104
    %686 = vmatprep.subr.mxu0 0.0
    %687 = vmatpush1.msra.mxu0 %v105
    %688 = vmatprep.subr.mxu0 0.0
    %689 = vmatpush1.msra.mxu0 %v106
    %690 = vmatprep.subr.mxu0 0.0
    %691 = vmatpush1.msra.mxu0 %v107
    %692 = vmatprep.subr.mxu0 0.0
    %693 = vmatpush1.msra.mxu0 0.0
    %694 = vmatprep.subr.mxu0 0.0
    %695 = vmatpush1.msra.mxu0 0.0
    %696 = vmatprep.subr.mxu0 0.0
    %697 = vmatpush1.msra.mxu0 0.0
    %698 = vmatprep.subr.mxu0 0.0
    %699 = vmatpush1.msra.mxu0 0.0
    %700 = vmatprep.subr.mxu0 0.0
    %701 = vmatpush1.msra.mxu0 0.0
    %702 = vmatprep.subr.mxu0 0.0
    %703 = vmatpush1.msra.mxu0 0.0
    %704 = vmatprep.subr.mxu0 0.0
    %705 = vmatpush1.msra.mxu0 0.0
    %706 = vmatprep.subr.mxu0 0.0
    %707 = vmatpush1.msra.mxu0 0.0
    %708 = vmatprep.subr.mxu0 0.0
    %709 = vmatpush1.msra.mxu0 0.0
    %710 = vmatprep.subr.mxu0 0.0
    %711 = vmatpush1.msra.mxu0 0.0
    %712 = vmatprep.subr.mxu0 0.0
    %713 = vmatpush1.msra.mxu0 0.0
    %714 = vmatprep.subr.mxu0 0.0
    %715 = vmatpush1.msra.mxu0 0.0
    %716 = vmatprep.subr.mxu0 0.0
    %717 = vmatpush1.msra.mxu0 0.0
    %718 = vmatprep.subr.mxu0 0.0
    %719 = vmatpush1.msra.mxu0 0.0
    %720 = vmatprep.subr.mxu0 0.0
    %721 = vmatpush1.msra.mxu0 0.0
    %722 = vmatprep.subr.mxu0 0.0
    %723 = vmatpush1.msra.mxu0 0.0
    %724 = vmatprep.mubr.f32.mxu0 0.0
    %725 = vmatmul.mubr.f32.gmra.mrb[0].mxu0 %v656
    %v726 = vpop.f32.mrb[0].mxu0
    %v727 = vadd.f32 0.0, %v726
    %v728 = vpop.f32.mrb[0].mxu0
    %729 = vdwg.mxu0
    %v730 = vadd.f32 %v659, %v727
    %v731 = vmul.f32 %v730, 0.5
    %v732 = vsel %vm110, %v731, %v730
    %v733 = vtanh.pop %v732
    %v734 = vadd.f32 %v733, 1.0
    %v735 = vmul.f32 %v734, 0.5
    %v736 = vsel %vm110, %v735, %v733
    %737 = vrot.lane.b32.xlu0 %v736, 96
    %v738 = vpop.permute.xlu0 %737
    %739 = vrot.lane.b32.xlu0 %v736, 64
    %v740 = vpop.permute.xlu0 %739
    %741 = vrot.lane.b32.xlu0 %v736, 32
    %v742 = vpop.permute.xlu0 %741
    %v743 = vmul.f32 %v738, %v654
    %v744 = vmul.f32 %v736, %v742
    %v745 = vadd.f32 %v743, %v744
    %v746 = vtanh.pop %v745
    %v747 = vmul.f32 %v740, %v746
    %748 = vst [vmem:[#allocation2 + $0x30] sm:$0xff] %v747
    %s749 = scalar_lea.vmem [#allocation3], 56
    %v750 = vld [vmem:[%s749] sm:$0xff]
    %751 = vmatprep.subr.mxu0 0.0
    %752 = vmatpush1.msra.mxu0 %v92
    %753 = vmatprep.subr.mxu0 0.0
    %754 = vmatpush1.msra.mxu0 %v93
    %755 = vmatprep.subr.mxu0 0.0
    %756 = vmatpush1.msra.mxu0 %v94
    %757 = vmatprep.subr.mxu0 0.0
    %758 = vmatpush1.msra.mxu0 %v95
    %759 = vmatprep.subr.mxu0 0.0
    %760 = vmatpush1.msra.mxu0 %v96
    %761 = vmatprep.subr.mxu0 0.0
    %762 = vmatpush1.msra.mxu0 %v97
    %763 = vmatprep.subr.mxu0 0.0
    %764 = vmatpush1.msra.mxu0 %v98
    %765 = vmatprep.subr.mxu0 0.0
    %766 = vmatpush1.msra.mxu0 %v99
    %767 = vmatprep.subr.mxu0 0.0
    %768 = vmatpush1.msra.mxu0 %v100
    %769 = vmatprep.subr.mxu0 0.0
    %770 = vmatpush1.msra.mxu0 %v101
    %771 = vmatprep.subr.mxu0 0.0
    %772 = vmatpush1.msra.mxu0 %v102
    %773 = vmatprep.subr.mxu0 0.0
    %774 = vmatpush1.msra.mxu0 %v103
    %775 = vmatprep.subr.mxu0 0.0
    %776 = vmatpush1.msra.mxu0 %v104
    %777 = vmatprep.subr.mxu0 0.0
    %778 = vmatpush1.msra.mxu0 %v105
    %779 = vmatprep.subr.mxu0 0.0
    %780 = vmatpush1.msra.mxu0 %v106
    %781 = vmatprep.subr.mxu0 0.0
    %782 = vmatpush1.msra.mxu0 %v107
    %783 = vmatprep.subr.mxu0 0.0
    %784 = vmatpush1.msra.mxu0 0.0
    %785 = vmatprep.subr.mxu0 0.0
    %786 = vmatpush1.msra.mxu0 0.0
    %787 = vmatprep.subr.mxu0 0.0
    %788 = vmatpush1.msra.mxu0 0.0
    %789 = vmatprep.subr.mxu0 0.0
    %790 = vmatpush1.msra.mxu0 0.0
    %791 = vmatprep.subr.mxu0 0.0
    %792 = vmatpush1.msra.mxu0 0.0
    %793 = vmatprep.subr.mxu0 0.0
    %794 = vmatpush1.msra.mxu0 0.0
    %795 = vmatprep.subr.mxu0 0.0
    %796 = vmatpush1.msra.mxu0 0.0
    %797 = vmatprep.subr.mxu0 0.0
    %798 = vmatpush1.msra.mxu0 0.0
    %799 = vmatprep.subr.mxu0 0.0
    %800 = vmatpush1.msra.mxu0 0.0
    %801 = vmatprep.subr.mxu0 0.0
    %802 = vmatpush1.msra.mxu0 0.0
    %803 = vmatprep.subr.mxu0 0.0
    %804 = vmatpush1.msra.mxu0 0.0
    %805 = vmatprep.subr.mxu0 0.0
    %806 = vmatpush1.msra.mxu0 0.0
    %807 = vmatprep.subr.mxu0 0.0
    %808 = vmatpush1.msra.mxu0 0.0
    %809 = vmatprep.subr.mxu0 0.0
    %810 = vmatpush1.msra.mxu0 0.0
    %811 = vmatprep.subr.mxu0 0.0
    %812 = vmatpush1.msra.mxu0 0.0
    %813 = vmatprep.subr.mxu0 0.0
    %814 = vmatpush1.msra.mxu0 0.0
    %815 = vmatprep.mubr.f32.mxu0 0.0
    %816 = vmatmul.mubr.f32.gmra.mrb[0].mxu0 %v747
    %v817 = vpop.f32.mrb[0].mxu0
    %v818 = vadd.f32 0.0, %v817
    %v819 = vpop.f32.mrb[0].mxu0
    %820 = vdwg.mxu0
    %v821 = vadd.f32 %v750, %v818
    %v822 = vmul.f32 %v821, 0.5
    %v823 = vsel %vm110, %v822, %v821
    %v824 = vtanh.pop %v823
    %v825 = vadd.f32 %v824, 1.0
    %v826 = vmul.f32 %v825, 0.5
    %v827 = vsel %vm110, %v826, %v824
    %828 = vrot.lane.b32.xlu0 %v827, 96
    %v829 = vpop.permute.xlu0 %828
    %830 = vrot.lane.b32.xlu0 %v827, 64
    %v831 = vpop.permute.xlu0 %830
    %832 = vrot.lane.b32.xlu0 %v827, 32
    %v833 = vpop.permute.xlu0 %832
    %v834 = vmul.f32 %v829, %v745
    %v835 = vmul.f32 %v827, %v833
    %v836 = vadd.f32 %v834, %v835
    %v837 = vtanh.pop %v836
    %v838 = vmul.f32 %v831, %v837
    %839 = vst [vmem:[#allocation2 + $0x38] sm:$0xff] %v838
    %840 = vst [vmem:[#allocation13] sm:$0xff] %v838
    %841 = vst [vmem:[#allocation15] sm:$0xff] %v836
    %v842 = vld [vmem:[#allocation2] sm:$0xff]
    %v843 = vld [vmem:[#allocation2 + $0x8] sm:$0xff]
    %v844 = vld [vmem:[#allocation2 + $0x10] sm:$0xff]
    %v845 = vld [vmem:[#allocation2 + $0x18] sm:$0xff]
    %v846 = vld [vmem:[#allocation2 + $0x20] sm:$0xff]
    %v847 = vld [vmem:[#allocation2 + $0x28] sm:$0xff]
    %v848 = vld [vmem:[#allocation2 + $0x30] sm:$0xff]
    %v849 = vld [vmem:[#allocation2 + $0x38] sm:$0xff]
    %v850 = vld [vmem:[#allocation11] sm:$0xff]
    %v851 = vld [vmem:[#allocation11 + $0x8] sm:$0xff]
    %v852 = vld [vmem:[#allocation11 + $0x10] sm:$0xff]
    %v853 = vld [vmem:[#allocation11 + $0x18] sm:$0xff]
    %v854 = vld [vmem:[#allocation11 + $0x20] sm:$0xff]
    %v855 = vld [vmem:[#allocation11 + $0x28] sm:$0xff]
    %v856 = vld [vmem:[#allocation11 + $0x30] sm:$0xff]
    %v857 = vld [vmem:[#allocation11 + $0x38] sm:$0xff]
    %v858 = vld [vmem:[#allocation11 + $0x40] sm:$0xff]
    %v859 = vld [vmem:[#allocation11 + $0x48] sm:$0xff]
    %v860 = vld [vmem:[#allocation11 + $0x50] sm:$0xff]
    %v861 = vld [vmem:[#allocation11 + $0x58] sm:$0xff]
    %v862 = vld [vmem:[#allocation11 + $0x60] sm:$0xff]
    %v863 = vld [vmem:[#allocation11 + $0x68] sm:$0xff]
    %v864 = vld [vmem:[#allocation11 + $0x70] sm:$0xff]
    %v865 = vld [vmem:[#allocation11 + $0x78] sm:$0xff]
    %v866 = vld [vmem:[%s5] sm:$0x1]
    %v868 = vlaneseq
    %v869 = vshrl.u32 %v868, 7
    %v870 = vsub.s32 0, %v869
    %v871 = vrot.slane %v866, %v870
    %873 = vmatprep.subr.mxu0 0.0
    %874 = vmatpush1.msra.mxu0 %v850
    %875 = vmatprep.subr.mxu0 0.0
    %876 = vmatpush1.msra.mxu0 %v851
    %877 = vmatprep.subr.mxu0 0.0
    %878 = vmatpush1.msra.mxu0 %v852
    %879 = vmatprep.subr.mxu0 0.0
    %880 = vmatpush1.msra.mxu0 %v853
    %881 = vmatprep.subr.mxu0 0.0
    %882 = vmatpush1.msra.mxu0 %v854
    %883 = vmatprep.subr.mxu0 0.0
    %884 = vmatpush1.msra.mxu0 %v855
    %885 = vmatprep.subr.mxu0 0.0
    %886 = vmatpush1.msra.mxu0 %v856
    %887 = vmatprep.subr.mxu0 0.0
    %888 = vmatpush1.msra.mxu0 %v857
    %889 = vmatprep.subr.mxu0 0.0
    %890 = vmatpush1.msra.mxu0 %v858
    %891 = vmatprep.subr.mxu0 0.0
    %892 = vmatpush1.msra.mxu0 %v859
    %893 = vmatprep.subr.mxu0 0.0
    %894 = vmatpush1.msra.mxu0 %v860
    %895 = vmatprep.subr.mxu0 0.0
    %896 = vmatpush1.msra.mxu0 %v861
    %897 = vmatprep.subr.mxu0 0.0
    %898 = vmatpush1.msra.mxu0 %v862
    %899 = vmatprep.subr.mxu0 0.0
    %900 = vmatpush1.msra.mxu0 %v863
    %901 = vmatprep.subr.mxu0 0.0
    %902 = vmatpush1.msra.mxu0 %v864
    %903 = vmatprep.subr.mxu0 0.0
    %904 = vmatpush1.msra.mxu0 %v865
    %905 = vmatprep.subr.mxu0 0.0
    %906 = vmatpush1.msra.mxu0 0.0
    %907 = vmatprep.subr.mxu0 0.0
    %908 = vmatpush1.msra.mxu0 0.0
    %909 = vmatprep.subr.mxu0 0.0
    %910 = vmatpush1.msra.mxu0 0.0
    %911 = vmatprep.subr.mxu0 0.0
    %912 = vmatpush1.msra.mxu0 0.0
    %913 = vmatprep.subr.mxu0 0.0
    %914 = vmatpush1.msra.mxu0 0.0
    %915 = vmatprep.subr.mxu0 0.0
    %916 = vmatpush1.msra.mxu0 0.0
    %917 = vmatprep.subr.mxu0 0.0
    %918 = vmatpush1.msra.mxu0 0.0
    %919 = vmatprep.subr.mxu0 0.0
    %920 = vmatpush1.msra.mxu0 0.0
    %921 = vmatprep.subr.mxu0 0.0
    %922 = vmatpush1.msra.mxu0 0.0
    %923 = vmatprep.subr.mxu0 0.0
    %924 = vmatpush1.msra.mxu0 0.0
    %925 = vmatprep.subr.mxu0 0.0
    %926 = vmatpush1.msra.mxu0 0.0
    %927 = vmatprep.subr.mxu0 0.0
    %928 = vmatpush1.msra.mxu0 0.0
    %929 = vmatprep.subr.mxu0 0.0
    %930 = vmatpush1.msra.mxu0 0.0
    %931 = vmatprep.subr.mxu0 0.0
    %932 = vmatpush1.msra.mxu0 0.0
    %933 = vmatprep.subr.mxu0 0.0
    %934 = vmatpush1.msra.mxu0 0.0
    %935 = vmatprep.subr.mxu0 0.0
    %936 = vmatpush1.msra.mxu0 0.0
    %937 = vmatprep.mubr.f32.mxu0 0.0
    %938 = vmatmul.mubr.f32.gmra.mrb[0].mxu0 %v842
    %v939 = vpop.f32.mrb[0].mxu0
    %v940 = vadd.f32 %v871, %v939
    %v941 = vpop.f32.mrb[0].mxu0
    %942 = vmatprep.mubr.f32.mxu0 0.0
    %943 = vmatmul.mubr.f32.gmra.mrb[0].mxu0 %v843
    %v944 = vpop.f32.mrb[0].mxu0
    %v945 = vadd.f32 %v871, %v944
    %v946 = vpop.f32.mrb[0].mxu0
    %947 = vmatprep.mubr.f32.mxu0 0.0
    %948 = vmatmul.mubr.f32.gmra.mrb[0].mxu0 %v844
    %v949 = vpop.f32.mrb[0].mxu0
    %v950 = vadd.f32 %v871, %v949
    %v951 = vpop.f32.mrb[0].mxu0
    %952 = vmatprep.mubr.f32.mxu0 0.0
    %953 = vmatmul.mubr.f32.gmra.mrb[0].mxu0 %v845
    %v954 = vpop.f32.mrb[0].mxu0
    %v955 = vadd.f32 %v871, %v954
    %v956 = vpop.f32.mrb[0].mxu0
    %957 = vmatprep.mubr.f32.mxu0 0.0
    %958 = vmatmul.mubr.f32.gmra.mrb[0].mxu0 %v846
    %v959 = vpop.f32.mrb[0].mxu0
    %v960 = vadd.f32 %v871, %v959
    %v961 = vpop.f32.mrb[0].mxu0
    %962 = vmatprep.mubr.f32.mxu0 0.0
    %963 = vmatmul.mubr.f32.gmra.mrb[0].mxu0 %v847
    %v964 = vpop.f32.mrb[0].mxu0
    %v965 = vadd.f32 %v871, %v964
    %v966 = vpop.f32.mrb[0].mxu0
    %967 = vmatprep.mubr.f32.mxu0 0.0
    %968 = vmatmul.mubr.f32.gmra.mrb[0].mxu0 %v848
    %v969 = vpop.f32.mrb[0].mxu0
    %v970 = vadd.f32 %v871, %v969
    %v971 = vpop.f32.mrb[0].mxu0
    %972 = vmatprep.mubr.f32.mxu0 0.0
    %973 = vmatmul.mubr.f32.gmra.mrb[0].mxu0 %v849
    %v974 = vpop.f32.mrb[0].mxu0
    %v975 = vadd.f32 %v871, %v974
    %v976 = vpop.f32.mrb[0].mxu0
    %977 = vdwg.mxu0
    %978 = vst [vmem:[#allocation12] sm:$0xff] %v940
    %979 = vst [vmem:[#allocation12 + $0x8] sm:$0xff] %v945
    %980 = vst [vmem:[#allocation12 + $0x10] sm:$0xff] %v950
    %981 = vst [vmem:[#allocation12 + $0x18] sm:$0xff] %v955
    %982 = vst [vmem:[#allocation12 + $0x20] sm:$0xff] %v960
    %983 = vst [vmem:[#allocation12 + $0x28] sm:$0xff] %v965
    %984 = vst [vmem:[#allocation12 + $0x30] sm:$0xff] %v970
    %985 = vst [vmem:[#allocation12 + $0x38] sm:$0xff] %v975
    // Predicated region
    $region46: #{tpu_custom_call.1} parent=1 // pred_check
      _
    $region47: #{tpu_custom_call.1} parent=1 // pred_check_branch
      %987 = sbr.rel (0) target = $region49
    $region48: #{tpu_custom_call.1} parent=1 // pred_region
      %s989 = ssub.s32 1024, 1024
      %990 = vsyncadd [#allocation5], %s989
      %s991 = sshll.u32 [#allocation12], 4
      %s992 = int_to_ptr.vmem [resolvable:$true] %s991
      %997 = dma.vmem_to_hbm [thread:$0]  %s992, 1024, %s6, [#allocation5], 128, 128, 8
    $region49: #{tpu_custom_call.1} parent=1 // pred_fallthru
      _
    // Predicated region
    $region50: #{tpu_custom_call.1} parent=1 // pred_check
      _
    $region51: #{tpu_custom_call.1} parent=1 // pred_check_branch
      %999 = sbr.rel (0) target = $region53
    $region52: #{tpu_custom_call.1} parent=1 // pred_region
      %s1001 = ssub.s32 128, 128
      %1002 = vsyncadd [#allocation14], %s1001
      %s1004 = sshll.u32 [#allocation13], 4
      %s1005 = int_to_ptr.vmem [resolvable:$true] %s1004
      %1007 = dma.vmem_to_hbm [thread:$0]  %s1005, 128, %s7, [#allocation14]
    $region53: #{tpu_custom_call.1} parent=1 // pred_fallthru
      _
    // Predicated region
    $region54: #{tpu_custom_call.1} parent=1 // pred_check
      _
    $region55: #{tpu_custom_call.1} parent=1 // pred_check_branch
      %1009 = sbr.rel (0) target = $region57
    $region56: #{tpu_custom_call.1} parent=1 // pred_region
      %s1011 = ssub.s32 128, 128
      %1012 = vsyncadd [#allocation14], %s1011
      %s1014 = sshll.u32 [#allocation15], 4
      %s1015 = int_to_ptr.vmem [resolvable:$true] %s1014
      %1017 = dma.vmem_to_hbm [thread:$0]  %s1015, 128, %s8, [#allocation14]
    $region57: #{tpu_custom_call.1} parent=1 // pred_fallthru
      _
    // Predicated region
    $region58: #{tpu_custom_call.1} parent=1 // pred_check
      _
    $region59: #{tpu_custom_call.1} parent=1 // pred_check_branch
      %1019 = sbr.rel (0) target = $region61
    $region60: #{tpu_custom_call.1} parent=1 // pred_region
      %1020 = dma.done [#allocation5], 1024
    $region61: #{tpu_custom_call.1} parent=1 // pred_fallthru
      _
    // Predicated region
    $region62: #{tpu_custom_call.1} parent=1 // pred_check
      _
    $region63: #{tpu_custom_call.1} parent=1 // pred_check_branch
      %1022 = sbr.rel (0) target = $region65
    $region64: #{tpu_custom_call.1} parent=1 // pred_region
      %1023 = dma.done [#allocation14], 128
    $region65: #{tpu_custom_call.1} parent=1 // pred_fallthru
      _
    // Predicated region
    $region66: #{tpu_custom_call.1} parent=1 // pred_check
      _
    $region67: #{tpu_custom_call.1} parent=1 // pred_check_branch
      %1025 = sbr.rel (0) target = $region69
    $region68: #{tpu_custom_call.1} parent=1 // pred_region
      %1026 = dma.done [#allocation14], 128
    $region69: #{tpu_custom_call.1} parent=1 // pred_fallthru
      _
    %1027 = vsyncpa [#allocation4], 1
    %1028 = vsyncpa [#allocation7], 1
    %1029 = vsyncpa [#allocation10], 1
    %1030 = vsyncpa [#allocation5], 1
    %1031 = vsyncpa [#allocation14], 1

</llo_original>
